<compile_context>
chip_gen: v5e
topology: v5e:2x2
jax: 0.10.0
libtpu: 0.0.40
codegen_flags: <defaults>
</compile_context>

<pallas_src>
import jax
import jax.numpy as jnp
from jax import lax
from jax.experimental import pallas as pl
from jax.experimental.pallas import tpu as pltpu


def _cdiv(a, b):
    return -(-a // b)


# ---------------------------------------------------------------------------
# Kernel bodies
# ---------------------------------------------------------------------------

def _vpu_kernel(t_ref, v_ref, wt_ref, bt_ref, wv_ref, bv_ref, o_ref):
    """Small-C path (C < 8): channel mix as C*C scalar-broadcast FMAs on the VPU.

    Works for both block layouts:
      3-D blocks: (tile_b, C, tile_p)
      4-D blocks: (tile_b, C, s_tile, 128)   (pixels packed into sublanes)
    wt_ref/wv_ref: (C, C) f32 in SMEM; bt_ref/bv_ref: (C,) f32 in SMEM.
    """
    C = o_ref.shape[1]
    for co in range(C):
        t_lin = wt_ref[co, 0] * t_ref[:, 0].astype(jnp.float32)
        v_lin = wv_ref[co, 0] * v_ref[:, 0].astype(jnp.float32)
        for ci in range(1, C):
            t_lin = t_lin + wt_ref[co, ci] * t_ref[:, ci].astype(jnp.float32)
            v_lin = v_lin + wv_ref[co, ci] * v_ref[:, ci].astype(jnp.float32)
        t_gate = jax.nn.sigmoid(t_lin + bt_ref[co])
        v_gate = jax.nn.sigmoid(v_lin + bv_ref[co])
        o_ref[:, co] = (t_gate * t_ref[:, co].astype(jnp.float32)
                        + v_gate * v_ref[:, co].astype(jnp.float32)
                        ).astype(o_ref.dtype)


def _mxu_kernel(t_ref, v_ref, wt_ref, bt_ref, wv_ref, bv_ref, o_ref):
    """C >= 8 path: 1x1 conv as an MXU matmul (W @ X) per block batch element.

    Blocks: (tile_b, C, tile_p). wt/wv: (C, C) VMEM; bt/bv: (C, 1) f32 VMEM.
    """
    tile_b = o_ref.shape[0]
    wt = wt_ref[...]
    wv = wv_ref[...]
    bt = bt_ref[...]
    bv = bv_ref[...]
    for b in range(tile_b):                    # static unroll, tile_b <= 8
        t = t_ref[b]                           # (C, tile_p), pixel-lane dense
        v = v_ref[b]
        t_lin = jnp.dot(wt, t, preferred_element_type=jnp.float32,
                        precision=lax.Precision.HIGHEST) + bt
        v_lin = jnp.dot(wv, v, preferred_element_type=jnp.float32,
                        precision=lax.Precision.HIGHEST) + bv
        o_ref[b] = (jax.nn.sigmoid(t_lin) * t.astype(jnp.float32)
                    + jax.nn.sigmoid(v_lin) * v.astype(jnp.float32)
                    ).astype(o_ref.dtype)


# ---------------------------------------------------------------------------
# Wrapper
# ---------------------------------------------------------------------------

def fusion_gated(t_feat, v_feat, wt, bt, wv, bv):
    """Gated fusion: sigmoid(conv1x1_t(t))*t + sigmoid(conv1x1_v(v))*v  (NCHW).

    wt/wv: (C, C) (1x1 conv weights as a matrix); bt/bv: (C,).
    """
    B, C, H, W = t_feat.shape
    P = H * W
    itemsize = jnp.dtype(t_feat.dtype).itemsize

    # Device-aware VMEM budget -> per-stream block target (~3-4 MiB).
    try:
        vmem_cap = int(pltpu.get_tpu_info().vmem_capacity_bytes)
    except Exception:
        vmem_cap = 64 << 20                      # conservative: v7x per-TC VMEM
    usable = (vmem_cap * 3) // 4
    # 3 streams x 2 pipeline buffers + in-kernel f32 temporaries ~= 12-16 blocks.
    block_target = max(256 << 10, min(4 << 20, usable // 16))
    vmem_limit = int(max(32 << 20, min(usable, 112 << 20)))

    total_bytes = B * C * P * itemsize
    use_mxu = C >= 8

    def _pick_tile_p():
        if P <= 128:
            return P                              # full extent (any size allowed)
        cap = max(128, (block_target // (C * itemsize) // 128) * 128)
        return int(min((P // 128) * 128, cap))

    if use_mxu or P % 128 != 0:
        # ---- 3-D layout (B, C, P): pixel axis lane-dense, no HBM transpose ----
        tile_p = _pick_tile_p()
        max_b = 8 if use_mxu else B               # MXU kernel unrolls over batch
        tile_b = int(max(1, min(B, max_b,
                                block_target // max(1, C * tile_p * itemsize))))
        gb, gp = _cdiv(B, tile_b), _cdiv(P, tile_p)
        if gb * gp == 1 and total_bytes > (1 << 19):
            # keep >=2 parallel grid steps so both v7x TensorCores get work
            if B >= 2:
                tile_b = _cdiv(B, 2)
            elif tile_p > 128 and P > 128:
                tile_p = max(128, (_cdiv(P, 2) // 128) * 128)
            gb, gp = _cdiv(B, tile_b), _cdiv(P, tile_p)

        block = (tile_b, C, tile_p)
        idx = lambda b, p: (b, 0, p)
        t_in = t_feat.reshape(B, C, P)            # free reshape
        v_in = v_feat.reshape(B, C, P)
        out_shape = jax.ShapeDtypeStruct((B, C, P), t_feat.dtype)

        if use_mxu:
            kernel = _mxu_kernel
            w_specs = [pl.BlockSpec((C, C), lambda b, p: (0, 0)),
                       pl.BlockSpec((C, 1), lambda b, p: (0, 0)),
                       pl.BlockSpec((C, C), lambda b, p: (0, 0)),
                       pl.BlockSpec((C, 1), lambda b, p: (0, 0))]
            w_args = (wt, bt.reshape(C, 1).astype(jnp.float32),
                      wv, bv.reshape(C, 1).astype(jnp.float32))
        else:
            kernel = _vpu_kernel
            smem = pl.BlockSpec(memory_space=pltpu.MemorySpace.SMEM)
            w_specs = [smem, smem, smem, smem]
            w_args = (wt.astype(jnp.float32), bt.reshape(C).astype(jnp.float32),
                      wv.astype(jnp.float32), bv.reshape(C).astype(jnp.float32))
    else:
        # ---- small C and P % 128 == 0: sublane-packed 4-D layout ----
        S = P // 128
        row_bytes = C * 128 * itemsize
        if S <= 8:
            s_tile = S
        else:
            s_cap = max(8, block_target // row_bytes)
            s_tile = int(min(S, (s_cap // 8) * 8))
        tile_b = int(max(1, min(B, block_target // max(1, s_tile * row_bytes))))
        gb, gp = _cdiv(B, tile_b), _cdiv(S, s_tile)
        if gb * gp == 1 and total_bytes > (1 << 19):
            if B >= 2:
                tile_b = _cdiv(B, 2)
            elif S >= 16:
                s_tile = max(8, ((S // 2) // 8) * 8)
            gb, gp = _cdiv(B, tile_b), _cdiv(S, s_tile)

        block = (tile_b, C, s_tile, 128)
        idx = lambda b, p: (b, 0, p, 0)
        t_in = t_feat.reshape(B, C, S, 128)       # free reshape
        v_in = v_feat.reshape(B, C, S, 128)
        out_shape = jax.ShapeDtypeStruct((B, C, S, 128), t_feat.dtype)

        kernel = _vpu_kernel
        smem = pl.BlockSpec(memory_space=pltpu.MemorySpace.SMEM)
        w_specs = [smem, smem, smem, smem]
        w_args = (wt.astype(jnp.float32), bt.reshape(C).astype(jnp.float32),
                  wv.astype(jnp.float32), bv.reshape(C).astype(jnp.float32))

    out = pl.pallas_call(
        kernel,
        out_shape=out_shape,
        grid=(gb, gp),
        in_specs=[pl.BlockSpec(block, idx),
                  pl.BlockSpec(block, idx),
                  w_specs[0], w_specs[1], w_specs[2], w_specs[3]],
        out_specs=pl.BlockSpec(block, idx),
        compiler_params=pltpu.CompilerParams(
            dimension_semantics=("parallel", "parallel"),
            vmem_limit_bytes=vmem_limit,
        ),
    )(t_in, v_in, *w_args)

    return out.reshape(B, C, H, W)


# ---------------------------------------------------------------------------
# Reference & test
# ---------------------------------------------------------------------------

def _reference(t_feat, v_feat, wt, bt, wv, bv):
    t_lin = jnp.einsum('oc,bchw->bohw', wt, t_feat,
                       precision=lax.Precision.HIGHEST) + bt.reshape(1, -1, 1, 1)
    v_lin = jnp.einsum('oc,bchw->bohw', wv, v_feat,
                       precision=lax.Precision.HIGHEST) + bv.reshape(1, -1, 1, 1)
    return jax.nn.sigmoid(t_lin) * t_feat + jax.nn.sigmoid(v_lin) * v_feat


if __name__ == "__main__":
    root = jax.random.PRNGKey(0)
    k_small, k_mid, k_large = jax.random.split(root, 3)

    def make_case(key, B, C, H, W, scale=0.1):
        ks = jax.random.split(key, 6)
        t = jax.random.normal(ks[0], (B, C, H, W), jnp.float32)
        v = jax.random.normal(ks[1], (B, C, H, W), jnp.float32)
        wt = jax.random.normal(ks[2], (C, C), jnp.float32) * scale
        bt = jax.random.normal(ks[3], (C,), jnp.float32) * scale
        wv = jax.random.normal(ks[4], (C, C), jnp.float32) * scale
        bv = jax.random.normal(ks[5], (C,), jnp.float32) * scale
        return t, v, wt, bt, wv, bv

    # --- Small C, P % 128 == 0: sublane-packed VPU path (module's natural shape).
    args = make_case(k_small, 2, 4, 16, 16)
    out = jax.block_until_ready(fusion_gated(*args))
    ref = _reference(*args)
    assert out.shape == args[0].shape
    assert jnp.allclose(out, ref, atol=1e-5, rtol=1e-5), "small-C mismatch"

    # --- Small C, P % 128 != 0: 3-D VPU path with a masked pixel-tail block.
    args = make_case(k_mid, 3, 4, 20, 20)
    out = jax.block_until_ready(fusion_gated(*args))
    ref = _reference(*args)
    assert out.shape == args[0].shape
    assert jnp.allclose(out, ref, atol=1e-5, rtol=1e-5), "odd-P mismatch"

    # --- Large C: MXU path.
    args = make_case(k_large, 1, 128, 8, 8, scale=0.05)
    out = jax.block_until_ready(fusion_gated(*args))
    ref = _reference(*args)
    assert out.shape == args[0].shape
    assert jnp.allclose(out, ref, atol=1e-2, rtol=1e-2), "large-C mismatch"

    print("KERNEL_OK")
</pallas_src>

<mosaic_0001>
module attributes {stable_mosaic.version = 11 : i64} {
  func.func @_vpu_kernel(%arg0: i32, %arg1: i32, %arg2: memref<2x4x2x128xf32, #tpu.memory_space<vmem>>, %arg3: memref<2x4x2x128xf32, #tpu.memory_space<vmem>>, %arg4: memref<4x4xf32, #tpu.memory_space<smem>>, %arg5: memref<4xf32, #tpu.memory_space<smem>>, %arg6: memref<4x4xf32, #tpu.memory_space<smem>>, %arg7: memref<4xf32, #tpu.memory_space<smem>>, %arg8: memref<2x4x2x128xf32, #tpu.memory_space<vmem>>) attributes {dimension_semantics = [#tpu.dimension_semantics<parallel>, #tpu.dimension_semantics<parallel>], iteration_bounds = array<i64: 1, 1>, scalar_prefetch = 0 : i64, scratch_operands = 0 : i64, tpu.core_type = #tpu.core_type<tc>, window_params = [{transform_indices = @transform_0, window_bounds = array<i64: 2, 4, 2, 128>}, {transform_indices = @transform_1, window_bounds = array<i64: 2, 4, 2, 128>}, {transform_indices = @transform_2, window_bounds = array<i64: 4, 4>}, {transform_indices = @transform_3, window_bounds = array<i64: 4>}, {transform_indices = @transform_4, window_bounds = array<i64: 4, 4>}, {transform_indices = @transform_5, window_bounds = array<i64: 4>}, {transform_indices = @transform_6, window_bounds = array<i64: 2, 4, 2, 128>}]} {
    %c0 = arith.constant 0 : index
    %c0_0 = arith.constant 0 : index
    %0 = memref.load %arg4[%c0, %c0_0] : memref<4x4xf32, #tpu.memory_space<smem>>
    %c0_1 = arith.constant 0 : index
    %c0_2 = arith.constant 0 : index
    %c0_3 = arith.constant 0 : index
    %c0_4 = arith.constant 0 : index
    %1 = vector.load %arg2[%c0_1, %c0_2, %c0_3, %c0_4] : memref<2x4x2x128xf32, #tpu.memory_space<vmem>>, vector<2x1x2x128xf32>
    %2 = vector.shape_cast %1 : vector<2x1x2x128xf32> to vector<2x2x128xf32>
    %3 = vector.broadcast %0 : f32 to vector<2x2x128xf32>
    %4 = arith.mulf %3, %2 : vector<2x2x128xf32>
    %c0_5 = arith.constant 0 : index
    %c0_6 = arith.constant 0 : index
    %5 = memref.load %arg6[%c0_5, %c0_6] : memref<4x4xf32, #tpu.memory_space<smem>>
    %c0_7 = arith.constant 0 : index
    %c0_8 = arith.constant 0 : index
    %c0_9 = arith.constant 0 : index
    %c0_10 = arith.constant 0 : index
    %6 = vector.load %arg3[%c0_7, %c0_8, %c0_9, %c0_10] : memref<2x4x2x128xf32, #tpu.memory_space<vmem>>, vector<2x1x2x128xf32>
    %7 = vector.shape_cast %6 : vector<2x1x2x128xf32> to vector<2x2x128xf32>
    %8 = vector.broadcast %5 : f32 to vector<2x2x128xf32>
    %9 = arith.mulf %8, %7 : vector<2x2x128xf32>
    %c0_11 = arith.constant 0 : index
    %c1 = arith.constant 1 : index
    %10 = memref.load %arg4[%c0_11, %c1] : memref<4x4xf32, #tpu.memory_space<smem>>
    %c0_12 = arith.constant 0 : index
    %c1_13 = arith.constant 1 : index
    %c0_14 = arith.constant 0 : index
    %c0_15 = arith.constant 0 : index
    %11 = vector.load %arg2[%c0_12, %c1_13, %c0_14, %c0_15] : memref<2x4x2x128xf32, #tpu.memory_space<vmem>>, vector<2x1x2x128xf32>
    %12 = vector.shape_cast %11 : vector<2x1x2x128xf32> to vector<2x2x128xf32>
    %13 = vector.broadcast %10 : f32 to vector<2x2x128xf32>
    %14 = arith.mulf %13, %12 : vector<2x2x128xf32>
    %15 = arith.addf %4, %14 : vector<2x2x128xf32>
    %c0_16 = arith.constant 0 : index
    %c1_17 = arith.constant 1 : index
    %16 = memref.load %arg6[%c0_16, %c1_17] : memref<4x4xf32, #tpu.memory_space<smem>>
    %c0_18 = arith.constant 0 : index
    %c1_19 = arith.constant 1 : index
    %c0_20 = arith.constant 0 : index
    %c0_21 = arith.constant 0 : index
    %17 = vector.load %arg3[%c0_18, %c1_19, %c0_20, %c0_21] : memref<2x4x2x128xf32, #tpu.memory_space<vmem>>, vector<2x1x2x128xf32>
    %18 = vector.shape_cast %17 : vector<2x1x2x128xf32> to vector<2x2x128xf32>
    %19 = vector.broadcast %16 : f32 to vector<2x2x128xf32>
    %20 = arith.mulf %19, %18 : vector<2x2x128xf32>
    %21 = arith.addf %9, %20 : vector<2x2x128xf32>
    %c0_22 = arith.constant 0 : index
    %c2 = arith.constant 2 : index
    %22 = memref.load %arg4[%c0_22, %c2] : memref<4x4xf32, #tpu.memory_space<smem>>
    %c0_23 = arith.constant 0 : index
    %c2_24 = arith.constant 2 : index
    %c0_25 = arith.constant 0 : index
    %c0_26 = arith.constant 0 : index
    %23 = vector.load %arg2[%c0_23, %c2_24, %c0_25, %c0_26] : memref<2x4x2x128xf32, #tpu.memory_space<vmem>>, vector<2x1x2x128xf32>
    %24 = vector.shape_cast %23 : vector<2x1x2x128xf32> to vector<2x2x128xf32>
    %25 = vector.broadcast %22 : f32 to vector<2x2x128xf32>
    %26 = arith.mulf %25, %24 : vector<2x2x128xf32>
    %27 = arith.addf %15, %26 : vector<2x2x128xf32>
    %c0_27 = arith.constant 0 : index
    %c2_28 = arith.constant 2 : index
    %28 = memref.load %arg6[%c0_27, %c2_28] : memref<4x4xf32, #tpu.memory_space<smem>>
    %c0_29 = arith.constant 0 : index
    %c2_30 = arith.constant 2 : index
    %c0_31 = arith.constant 0 : index
    %c0_32 = arith.constant 0 : index
    %29 = vector.load %arg3[%c0_29, %c2_30, %c0_31, %c0_32] : memref<2x4x2x128xf32, #tpu.memory_space<vmem>>, vector<2x1x2x128xf32>
    %30 = vector.shape_cast %29 : vector<2x1x2x128xf32> to vector<2x2x128xf32>
    %31 = vector.broadcast %28 : f32 to vector<2x2x128xf32>
    %32 = arith.mulf %31, %30 : vector<2x2x128xf32>
    %33 = arith.addf %21, %32 : vector<2x2x128xf32>
    %c0_33 = arith.constant 0 : index
    %c3 = arith.constant 3 : index
    %34 = memref.load %arg4[%c0_33, %c3] : memref<4x4xf32, #tpu.memory_space<smem>>
    %c0_34 = arith.constant 0 : index
    %c3_35 = arith.constant 3 : index
    %c0_36 = arith.constant 0 : index
    %c0_37 = arith.constant 0 : index
    %35 = vector.load %arg2[%c0_34, %c3_35, %c0_36, %c0_37] : memref<2x4x2x128xf32, #tpu.memory_space<vmem>>, vector<2x1x2x128xf32>
    %36 = vector.shape_cast %35 : vector<2x1x2x128xf32> to vector<2x2x128xf32>
    %37 = vector.broadcast %34 : f32 to vector<2x2x128xf32>
    %38 = arith.mulf %37, %36 : vector<2x2x128xf32>
    %39 = arith.addf %27, %38 : vector<2x2x128xf32>
    %c0_38 = arith.constant 0 : index
    %c3_39 = arith.constant 3 : index
    %40 = memref.load %arg6[%c0_38, %c3_39] : memref<4x4xf32, #tpu.memory_space<smem>>
    %c0_40 = arith.constant 0 : index
    %c3_41 = arith.constant 3 : index
    %c0_42 = arith.constant 0 : index
    %c0_43 = arith.constant 0 : index
    %41 = vector.load %arg3[%c0_40, %c3_41, %c0_42, %c0_43] : memref<2x4x2x128xf32, #tpu.memory_space<vmem>>, vector<2x1x2x128xf32>
    %42 = vector.shape_cast %41 : vector<2x1x2x128xf32> to vector<2x2x128xf32>
    %43 = vector.broadcast %40 : f32 to vector<2x2x128xf32>
    %44 = arith.mulf %43, %42 : vector<2x2x128xf32>
    %45 = arith.addf %33, %44 : vector<2x2x128xf32>
    %c0_44 = arith.constant 0 : index
    %46 = memref.load %arg5[%c0_44] : memref<4xf32, #tpu.memory_space<smem>>
    %47 = vector.broadcast %46 : f32 to vector<2x2x128xf32>
    %48 = arith.addf %39, %47 : vector<2x2x128xf32>
    %49 = arith.negf %48 : vector<2x2x128xf32>
    %50 = math.exp %49 : vector<2x2x128xf32>
    %cst = arith.constant 1.000000e+00 : f32
    %51 = vector.broadcast %cst : f32 to vector<2x2x128xf32>
    %52 = arith.addf %51, %50 : vector<2x2x128xf32>
    %53 = arith.divf %51, %52 : vector<2x2x128xf32>
    %c0_45 = arith.constant 0 : index
    %54 = memref.load %arg7[%c0_45] : memref<4xf32, #tpu.memory_space<smem>>
    %55 = vector.broadcast %54 : f32 to vector<2x2x128xf32>
    %56 = arith.addf %45, %55 : vector<2x2x128xf32>
    %57 = arith.negf %56 : vector<2x2x128xf32>
    %58 = math.exp %57 : vector<2x2x128xf32>
    %cst_46 = arith.constant 1.000000e+00 : f32
    %59 = vector.broadcast %cst_46 : f32 to vector<2x2x128xf32>
    %60 = arith.addf %59, %58 : vector<2x2x128xf32>
    %61 = arith.divf %59, %60 : vector<2x2x128xf32>
    %c0_47 = arith.constant 0 : index
    %c0_48 = arith.constant 0 : index
    %c0_49 = arith.constant 0 : index
    %c0_50 = arith.constant 0 : index
    %62 = vector.load %arg2[%c0_47, %c0_48, %c0_49, %c0_50] : memref<2x4x2x128xf32, #tpu.memory_space<vmem>>, vector<2x1x2x128xf32>
    %63 = vector.shape_cast %62 : vector<2x1x2x128xf32> to vector<2x2x128xf32>
    %64 = arith.mulf %53, %63 : vector<2x2x128xf32>
    %c0_51 = arith.constant 0 : index
    %c0_52 = arith.constant 0 : index
    %c0_53 = arith.constant 0 : index
    %c0_54 = arith.constant 0 : index
    %65 = vector.load %arg3[%c0_51, %c0_52, %c0_53, %c0_54] : memref<2x4x2x128xf32, #tpu.memory_space<vmem>>, vector<2x1x2x128xf32>
    %66 = vector.shape_cast %65 : vector<2x1x2x128xf32> to vector<2x2x128xf32>
    %67 = arith.mulf %61, %66 : vector<2x2x128xf32>
    %68 = arith.addf %64, %67 : vector<2x2x128xf32>
    %c0_55 = arith.constant 0 : index
    %c0_56 = arith.constant 0 : index
    %c0_57 = arith.constant 0 : index
    %c0_58 = arith.constant 0 : index
    %69 = vector.load %arg8[%c0_55, %c0_56, %c0_57, %c0_58] : memref<2x4x2x128xf32, #tpu.memory_space<vmem>>, vector<2x1x2x128xf32>
    %70 = vector.shape_cast %69 : vector<2x1x2x128xf32> to vector<2x2x128xf32>
    %71 = vector.shape_cast %68 : vector<2x2x128xf32> to vector<2x1x2x128xf32>
    tpu.vector_store %arg8[%c0_55, %c0_56, %c0_57, %c0_58], %71 {strides = array<i32>} : memref<2x4x2x128xf32, #tpu.memory_space<vmem>>, vector<2x1x2x128xf32>,
    %c1_59 = arith.constant 1 : index
    %c0_60 = arith.constant 0 : index
    %72 = memref.load %arg4[%c1_59, %c0_60] : memref<4x4xf32, #tpu.memory_space<smem>>
    %c0_61 = arith.constant 0 : index
    %c0_62 = arith.constant 0 : index
    %c0_63 = arith.constant 0 : index
    %c0_64 = arith.constant 0 : index
    %73 = vector.load %arg2[%c0_61, %c0_62, %c0_63, %c0_64] : memref<2x4x2x128xf32, #tpu.memory_space<vmem>>, vector<2x1x2x128xf32>
    %74 = vector.shape_cast %73 : vector<2x1x2x128xf32> to vector<2x2x128xf32>
    %75 = vector.broadcast %72 : f32 to vector<2x2x128xf32>
    %76 = arith.mulf %75, %74 : vector<2x2x128xf32>
    %c1_65 = arith.constant 1 : index
    %c0_66 = arith.constant 0 : index
    %77 = memref.load %arg6[%c1_65, %c0_66] : memref<4x4xf32, #tpu.memory_space<smem>>
    %c0_67 = arith.constant 0 : index
    %c0_68 = arith.constant 0 : index
    %c0_69 = arith.constant 0 : index
    %c0_70 = arith.constant 0 : index
    %78 = vector.load %arg3[%c0_67, %c0_68, %c0_69, %c0_70] : memref<2x4x2x128xf32, #tpu.memory_space<vmem>>, vector<2x1x2x128xf32>
    %79 = vector.shape_cast %78 : vector<2x1x2x128xf32> to vector<2x2x128xf32>
    %80 = vector.broadcast %77 : f32 to vector<2x2x128xf32>
    %81 = arith.mulf %80, %79 : vector<2x2x128xf32>
    %c1_71 = arith.constant 1 : index
    %c1_72 = arith.constant 1 : index
    %82 = memref.load %arg4[%c1_71, %c1_72] : memref<4x4xf32, #tpu.memory_space<smem>>
    %c0_73 = arith.constant 0 : index
    %c1_74 = arith.constant 1 : index
    %c0_75 = arith.constant 0 : index
    %c0_76 = arith.constant 0 : index
    %83 = vector.load %arg2[%c0_73, %c1_74, %c0_75, %c0_76] : memref<2x4x2x128xf32, #tpu.memory_space<vmem>>, vector<2x1x2x128xf32>
    %84 = vector.shape_cast %83 : vector<2x1x2x128xf32> to vector<2x2x128xf32>
    %85 = vector.broadcast %82 : f32 to vector<2x2x128xf32>
    %86 = arith.mulf %85, %84 : vector<2x2x128xf32>
    %87 = arith.addf %76, %86 : vector<2x2x128xf32>
    %c1_77 = arith.constant 1 : index
    %c1_78 = arith.constant 1 : index
    %88 = memref.load %arg6[%c1_77, %c1_78] : memref<4x4xf32, #tpu.memory_space<smem>>
    %c0_79 = arith.constant 0 : index
    %c1_80 = arith.constant 1 : index
    %c0_81 = arith.constant 0 : index
    %c0_82 = arith.constant 0 : index
    %89 = vector.load %arg3[%c0_79, %c1_80, %c0_81, %c0_82] : memref<2x4x2x128xf32, #tpu.memory_space<vmem>>, vector<2x1x2x128xf32>
    %90 = vector.shape_cast %89 : vector<2x1x2x128xf32> to vector<2x2x128xf32>
    %91 = vector.broadcast %88 : f32 to vector<2x2x128xf32>
    %92 = arith.mulf %91, %90 : vector<2x2x128xf32>
    %93 = arith.addf %81, %92 : vector<2x2x128xf32>
    %c1_83 = arith.constant 1 : index
    %c2_84 = arith.constant 2 : index
    %94 = memref.load %arg4[%c1_83, %c2_84] : memref<4x4xf32, #tpu.memory_space<smem>>
    %c0_85 = arith.constant 0 : index
    %c2_86 = arith.constant 2 : index
    %c0_87 = arith.constant 0 : index
    %c0_88 = arith.constant 0 : index
    %95 = vector.load %arg2[%c0_85, %c2_86, %c0_87, %c0_88] : memref<2x4x2x128xf32, #tpu.memory_space<vmem>>, vector<2x1x2x128xf32>
    %96 = vector.shape_cast %95 : vector<2x1x2x128xf32> to vector<2x2x128xf32>
    %97 = vector.broadcast %94 : f32 to vector<2x2x128xf32>
    %98 = arith.mulf %97, %96 : vector<2x2x128xf32>
    %99 = arith.addf %87, %98 : vector<2x2x128xf32>
    %c1_89 = arith.constant 1 : index
    %c2_90 = arith.constant 2 : index
    %100 = memref.load %arg6[%c1_89, %c2_90] : memref<4x4xf32, #tpu.memory_space<smem>>
    %c0_91 = arith.constant 0 : index
    %c2_92 = arith.constant 2 : index
    %c0_93 = arith.constant 0 : index
    %c0_94 = arith.constant 0 : index
    %101 = vector.load %arg3[%c0_91, %c2_92, %c0_93, %c0_94] : memref<2x4x2x128xf32, #tpu.memory_space<vmem>>, vector<2x1x2x128xf32>
    %102 = vector.shape_cast %101 : vector<2x1x2x128xf32> to vector<2x2x128xf32>
    %103 = vector.broadcast %100 : f32 to vector<2x2x128xf32>
    %104 = arith.mulf %103, %102 : vector<2x2x128xf32>
    %105 = arith.addf %93, %104 : vector<2x2x128xf32>
    %c1_95 = arith.constant 1 : index
    %c3_96 = arith.constant 3 : index
    %106 = memref.load %arg4[%c1_95, %c3_96] : memref<4x4xf32, #tpu.memory_space<smem>>
    %c0_97 = arith.constant 0 : index
    %c3_98 = arith.constant 3 : index
    %c0_99 = arith.constant 0 : index
    %c0_100 = arith.constant 0 : index
    %107 = vector.load %arg2[%c0_97, %c3_98, %c0_99, %c0_100] : memref<2x4x2x128xf32, #tpu.memory_space<vmem>>, vector<2x1x2x128xf32>
    %108 = vector.shape_cast %107 : vector<2x1x2x128xf32> to vector<2x2x128xf32>
    %109 = vector.broadcast %106 : f32 to vector<2x2x128xf32>
    %110 = arith.mulf %109, %108 : vector<2x2x128xf32>
    %111 = arith.addf %99, %110 : vector<2x2x128xf32>
    %c1_101 = arith.constant 1 : index
    %c3_102 = arith.constant 3 : index
    %112 = memref.load %arg6[%c1_101, %c3_102] : memref<4x4xf32, #tpu.memory_space<smem>>
    %c0_103 = arith.constant 0 : index
    %c3_104 = arith.constant 3 : index
    %c0_105 = arith.constant 0 : index
    %c0_106 = arith.constant 0 : index
    %113 = vector.load %arg3[%c0_103, %c3_104, %c0_105, %c0_106] : memref<2x4x2x128xf32, #tpu.memory_space<vmem>>, vector<2x1x2x128xf32>
    %114 = vector.shape_cast %113 : vector<2x1x2x128xf32> to vector<2x2x128xf32>
    %115 = vector.broadcast %112 : f32 to vector<2x2x128xf32>
    %116 = arith.mulf %115, %114 : vector<2x2x128xf32>
    %117 = arith.addf %105, %116 : vector<2x2x128xf32>
    %c1_107 = arith.constant 1 : index
    %118 = memref.load %arg5[%c1_107] : memref<4xf32, #tpu.memory_space<smem>>
    %119 = vector.broadcast %118 : f32 to vector<2x2x128xf32>
    %120 = arith.addf %111, %119 : vector<2x2x128xf32>
    %121 = arith.negf %120 : vector<2x2x128xf32>
    %122 = math.exp %121 : vector<2x2x128xf32>
    %cst_108 = arith.constant 1.000000e+00 : f32
    %123 = vector.broadcast %cst_108 : f32 to vector<2x2x128xf32>
    %124 = arith.addf %123, %122 : vector<2x2x128xf32>
    %125 = arith.divf %123, %124 : vector<2x2x128xf32>
    %c1_109 = arith.constant 1 : index
    %126 = memref.load %arg7[%c1_109] : memref<4xf32, #tpu.memory_space<smem>>
    %127 = vector.broadcast %126 : f32 to vector<2x2x128xf32>
    %128 = arith.addf %117, %127 : vector<2x2x128xf32>
    %129 = arith.negf %128 : vector<2x2x128xf32>
    %130 = math.exp %129 : vector<2x2x128xf32>
    %cst_110 = arith.constant 1.000000e+00 : f32
    %131 = vector.broadcast %cst_110 : f32 to vector<2x2x128xf32>
    %132 = arith.addf %131, %130 : vector<2x2x128xf32>
    %133 = arith.divf %131, %132 : vector<2x2x128xf32>
    %c0_111 = arith.constant 0 : index
    %c1_112 = arith.constant 1 : index
    %c0_113 = arith.constant 0 : index
    %c0_114 = arith.constant 0 : index
    %134 = vector.load %arg2[%c0_111, %c1_112, %c0_113, %c0_114] : memref<2x4x2x128xf32, #tpu.memory_space<vmem>>, vector<2x1x2x128xf32>
    %135 = vector.shape_cast %134 : vector<2x1x2x128xf32> to vector<2x2x128xf32>
    %136 = arith.mulf %125, %135 : vector<2x2x128xf32>
    %c0_115 = arith.constant 0 : index
    %c1_116 = arith.constant 1 : index
    %c0_117 = arith.constant 0 : index
    %c0_118 = arith.constant 0 : index
    %137 = vector.load %arg3[%c0_115, %c1_116, %c0_117, %c0_118] : memref<2x4x2x128xf32, #tpu.memory_space<vmem>>, vector<2x1x2x128xf32>
    %138 = vector.shape_cast %137 : vector<2x1x2x128xf32> to vector<2x2x128xf32>
    %139 = arith.mulf %133, %138 : vector<2x2x128xf32>
    %140 = arith.addf %136, %139 : vector<2x2x128xf32>
    %c0_119 = arith.constant 0 : index
    %c1_120 = arith.constant 1 : index
    %c0_121 = arith.constant 0 : index
    %c0_122 = arith.constant 0 : index
    %141 = vector.load %arg8[%c0_119, %c1_120, %c0_121, %c0_122] : memref<2x4x2x128xf32, #tpu.memory_space<vmem>>, vector<2x1x2x128xf32>
    %142 = vector.shape_cast %141 : vector<2x1x2x128xf32> to vector<2x2x128xf32>
    %143 = vector.shape_cast %140 : vector<2x2x128xf32> to vector<2x1x2x128xf32>
    tpu.vector_store %arg8[%c0_119, %c1_120, %c0_121, %c0_122], %143 {strides = array<i32>} : memref<2x4x2x128xf32, #tpu.memory_space<vmem>>, vector<2x1x2x128xf32>,
    %c2_123 = arith.constant 2 : index
    %c0_124 = arith.constant 0 : index
    %144 = memref.load %arg4[%c2_123, %c0_124] : memref<4x4xf32, #tpu.memory_space<smem>>
    %c0_125 = arith.constant 0 : index
    %c0_126 = arith.constant 0 : index
    %c0_127 = arith.constant 0 : index
    %c0_128 = arith.constant 0 : index
    %145 = vector.load %arg2[%c0_125, %c0_126, %c0_127, %c0_128] : memref<2x4x2x128xf32, #tpu.memory_space<vmem>>, vector<2x1x2x128xf32>
    %146 = vector.shape_cast %145 : vector<2x1x2x128xf32> to vector<2x2x128xf32>
    %147 = vector.broadcast %144 : f32 to vector<2x2x128xf32>
    %148 = arith.mulf %147, %146 : vector<2x2x128xf32>
    %c2_129 = arith.constant 2 : index
    %c0_130 = arith.constant 0 : index
    %149 = memref.load %arg6[%c2_129, %c0_130] : memref<4x4xf32, #tpu.memory_space<smem>>
    %c0_131 = arith.constant 0 : index
    %c0_132 = arith.constant 0 : index
    %c0_133 = arith.constant 0 : index
    %c0_134 = arith.constant 0 : index
    %150 = vector.load %arg3[%c0_131, %c0_132, %c0_133, %c0_134] : memref<2x4x2x128xf32, #tpu.memory_space<vmem>>, vector<2x1x2x128xf32>
    %151 = vector.shape_cast %150 : vector<2x1x2x128xf32> to vector<2x2x128xf32>
    %152 = vector.broadcast %149 : f32 to vector<2x2x128xf32>
    %153 = arith.mulf %152, %151 : vector<2x2x128xf32>
    %c2_135 = arith.constant 2 : index
    %c1_136 = arith.constant 1 : index
    %154 = memref.load %arg4[%c2_135, %c1_136] : memref<4x4xf32, #tpu.memory_space<smem>>
    %c0_137 = arith.constant 0 : index
    %c1_138 = arith.constant 1 : index
    %c0_139 = arith.constant 0 : index
    %c0_140 = arith.constant 0 : index
    %155 = vector.load %arg2[%c0_137, %c1_138, %c0_139, %c0_140] : memref<2x4x2x128xf32, #tpu.memory_space<vmem>>, vector<2x1x2x128xf32>
    %156 = vector.shape_cast %155 : vector<2x1x2x128xf32> to vector<2x2x128xf32>
    %157 = vector.broadcast %154 : f32 to vector<2x2x128xf32>
    %158 = arith.mulf %157, %156 : vector<2x2x128xf32>
    %159 = arith.addf %148, %158 : vector<2x2x128xf32>
    %c2_141 = arith.constant 2 : index
    %c1_142 = arith.constant 1 : index
    %160 = memref.load %arg6[%c2_141, %c1_142] : memref<4x4xf32, #tpu.memory_space<smem>>
    %c0_143 = arith.constant 0 : index
    %c1_144 = arith.constant 1 : index
    %c0_145 = arith.constant 0 : index
    %c0_146 = arith.constant 0 : index
    %161 = vector.load %arg3[%c0_143, %c1_144, %c0_145, %c0_146] : memref<2x4x2x128xf32, #tpu.memory_space<vmem>>, vector<2x1x2x128xf32>
    %162 = vector.shape_cast %161 : vector<2x1x2x128xf32> to vector<2x2x128xf32>
    %163 = vector.broadcast %160 : f32 to vector<2x2x128xf32>
    %164 = arith.mulf %163, %162 : vector<2x2x128xf32>
    %165 = arith.addf %153, %164 : vector<2x2x128xf32>
    %c2_147 = arith.constant 2 : index
    %c2_148 = arith.constant 2 : index
    %166 = memref.load %arg4[%c2_147, %c2_148] : memref<4x4xf32, #tpu.memory_space<smem>>
    %c0_149 = arith.constant 0 : index
    %c2_150 = arith.constant 2 : index
    %c0_151 = arith.constant 0 : index
    %c0_152 = arith.constant 0 : index
    %167 = vector.load %arg2[%c0_149, %c2_150, %c0_151, %c0_152] : memref<2x4x2x128xf32, #tpu.memory_space<vmem>>, vector<2x1x2x128xf32>
    %168 = vector.shape_cast %167 : vector<2x1x2x128xf32> to vector<2x2x128xf32>
    %169 = vector.broadcast %166 : f32 to vector<2x2x128xf32>
    %170 = arith.mulf %169, %168 : vector<2x2x128xf32>
    %171 = arith.addf %159, %170 : vector<2x2x128xf32>
    %c2_153 = arith.constant 2 : index
    %c2_154 = arith.constant 2 : index
    %172 = memref.load %arg6[%c2_153, %c2_154] : memref<4x4xf32, #tpu.memory_space<smem>>
    %c0_155 = arith.constant 0 : index
    %c2_156 = arith.constant 2 : index
    %c0_157 = arith.constant 0 : index
    %c0_158 = arith.constant 0 : index
    %173 = vector.load %arg3[%c0_155, %c2_156, %c0_157, %c0_158] : memref<2x4x2x128xf32, #tpu.memory_space<vmem>>, vector<2x1x2x128xf32>
    %174 = vector.shape_cast %173 : vector<2x1x2x128xf32> to vector<2x2x128xf32>
    %175 = vector.broadcast %172 : f32 to vector<2x2x128xf32>
    %176 = arith.mulf %175, %174 : vector<2x2x128xf32>
    %177 = arith.addf %165, %176 : vector<2x2x128xf32>
    %c2_159 = arith.constant 2 : index
    %c3_160 = arith.constant 3 : index
    %178 = memref.load %arg4[%c2_159, %c3_160] : memref<4x4xf32, #tpu.memory_space<smem>>
    %c0_161 = arith.constant 0 : index
    %c3_162 = arith.constant 3 : index
    %c0_163 = arith.constant 0 : index
    %c0_164 = arith.constant 0 : index
    %179 = vector.load %arg2[%c0_161, %c3_162, %c0_163, %c0_164] : memref<2x4x2x128xf32, #tpu.memory_space<vmem>>, vector<2x1x2x128xf32>
    %180 = vector.shape_cast %179 : vector<2x1x2x128xf32> to vector<2x2x128xf32>
    %181 = vector.broadcast %178 : f32 to vector<2x2x128xf32>
    %182 = arith.mulf %181, %180 : vector<2x2x128xf32>
    %183 = arith.addf %171, %182 : vector<2x2x128xf32>
    %c2_165 = arith.constant 2 : index
    %c3_166 = arith.constant 3 : index
    %184 = memref.load %arg6[%c2_165, %c3_166] : memref<4x4xf32, #tpu.memory_space<smem>>
    %c0_167 = arith.constant 0 : index
    %c3_168 = arith.constant 3 : index
    %c0_169 = arith.constant 0 : index
    %c0_170 = arith.constant 0 : index
    %185 = vector.load %arg3[%c0_167, %c3_168, %c0_169, %c0_170] : memref<2x4x2x128xf32, #tpu.memory_space<vmem>>, vector<2x1x2x128xf32>
    %186 = vector.shape_cast %185 : vector<2x1x2x128xf32> to vector<2x2x128xf32>
    %187 = vector.broadcast %184 : f32 to vector<2x2x128xf32>
    %188 = arith.mulf %187, %186 : vector<2x2x128xf32>
    %189 = arith.addf %177, %188 : vector<2x2x128xf32>
    %c2_171 = arith.constant 2 : index
    %190 = memref.load %arg5[%c2_171] : memref<4xf32, #tpu.memory_space<smem>>
    %191 = vector.broadcast %190 : f32 to vector<2x2x128xf32>
    %192 = arith.addf %183, %191 : vector<2x2x128xf32>
    %193 = arith.negf %192 : vector<2x2x128xf32>
    %194 = math.exp %193 : vector<2x2x128xf32>
    %cst_172 = arith.constant 1.000000e+00 : f32
    %195 = vector.broadcast %cst_172 : f32 to vector<2x2x128xf32>
    %196 = arith.addf %195, %194 : vector<2x2x128xf32>
    %197 = arith.divf %195, %196 : vector<2x2x128xf32>
    %c2_173 = arith.constant 2 : index
    %198 = memref.load %arg7[%c2_173] : memref<4xf32, #tpu.memory_space<smem>>
    %199 = vector.broadcast %198 : f32 to vector<2x2x128xf32>
    %200 = arith.addf %189, %199 : vector<2x2x128xf32>
    %201 = arith.negf %200 : vector<2x2x128xf32>
    %202 = math.exp %201 : vector<2x2x128xf32>
    %cst_174 = arith.constant 1.000000e+00 : f32
    %203 = vector.broadcast %cst_174 : f32 to vector<2x2x128xf32>
    %204 = arith.addf %203, %202 : vector<2x2x128xf32>
    %205 = arith.divf %203, %204 : vector<2x2x128xf32>
    %c0_175 = arith.constant 0 : index
    %c2_176 = arith.constant 2 : index
    %c0_177 = arith.constant 0 : index
    %c0_178 = arith.constant 0 : index
    %206 = vector.load %arg2[%c0_175, %c2_176, %c0_177, %c0_178] : memref<2x4x2x128xf32, #tpu.memory_space<vmem>>, vector<2x1x2x128xf32>
    %207 = vector.shape_cast %206 : vector<2x1x2x128xf32> to vector<2x2x128xf32>
    %208 = arith.mulf %197, %207 : vector<2x2x128xf32>
    %c0_179 = arith.constant 0 : index
    %c2_180 = arith.constant 2 : index
    %c0_181 = arith.constant 0 : index
    %c0_182 = arith.constant 0 : index
    %209 = vector.load %arg3[%c0_179, %c2_180, %c0_181, %c0_182] : memref<2x4x2x128xf32, #tpu.memory_space<vmem>>, vector<2x1x2x128xf32>
    %210 = vector.shape_cast %209 : vector<2x1x2x128xf32> to vector<2x2x128xf32>
    %211 = arith.mulf %205, %210 : vector<2x2x128xf32>
    %212 = arith.addf %208, %211 : vector<2x2x128xf32>
    %c0_183 = arith.constant 0 : index
    %c2_184 = arith.constant 2 : index
    %c0_185 = arith.constant 0 : index
    %c0_186 = arith.constant 0 : index
    %213 = vector.load %arg8[%c0_183, %c2_184, %c0_185, %c0_186] : memref<2x4x2x128xf32, #tpu.memory_space<vmem>>, vector<2x1x2x128xf32>
    %214 = vector.shape_cast %213 : vector<2x1x2x128xf32> to vector<2x2x128xf32>
    %215 = vector.shape_cast %212 : vector<2x2x128xf32> to vector<2x1x2x128xf32>
    tpu.vector_store %arg8[%c0_183, %c2_184, %c0_185, %c0_186], %215 {strides = array<i32>} : memref<2x4x2x128xf32, #tpu.memory_space<vmem>>, vector<2x1x2x128xf32>,
    %c3_187 = arith.constant 3 : index
    %c0_188 = arith.constant 0 : index
    %216 = memref.load %arg4[%c3_187, %c0_188] : memref<4x4xf32, #tpu.memory_space<smem>>
    %c0_189 = arith.constant 0 : index
    %c0_190 = arith.constant 0 : index
    %c0_191 = arith.constant 0 : index
    %c0_192 = arith.constant 0 : index
    %217 = vector.load %arg2[%c0_189, %c0_190, %c0_191, %c0_192] : memref<2x4x2x128xf32, #tpu.memory_space<vmem>>, vector<2x1x2x128xf32>
    %218 = vector.shape_cast %217 : vector<2x1x2x128xf32> to vector<2x2x128xf32>
    %219 = vector.broadcast %216 : f32 to vector<2x2x128xf32>
    %220 = arith.mulf %219, %218 : vector<2x2x128xf32>
    %c3_193 = arith.constant 3 : index
    %c0_194 = arith.constant 0 : index
    %221 = memref.load %arg6[%c3_193, %c0_194] : memref<4x4xf32, #tpu.memory_space<smem>>
    %c0_195 = arith.constant 0 : index
    %c0_196 = arith.constant 0 : index
    %c0_197 = arith.constant 0 : index
    %c0_198 = arith.constant 0 : index
    %222 = vector.load %arg3[%c0_195, %c0_196, %c0_197, %c0_198] : memref<2x4x2x128xf32, #tpu.memory_space<vmem>>, vector<2x1x2x128xf32>
    %223 = vector.shape_cast %222 : vector<2x1x2x128xf32> to vector<2x2x128xf32>
    %224 = vector.broadcast %221 : f32 to vector<2x2x128xf32>
    %225 = arith.mulf %224, %223 : vector<2x2x128xf32>
    %c3_199 = arith.constant 3 : index
    %c1_200 = arith.constant 1 : index
    %226 = memref.load %arg4[%c3_199, %c1_200] : memref<4x4xf32, #tpu.memory_space<smem>>
    %c0_201 = arith.constant 0 : index
    %c1_202 = arith.constant 1 : index
    %c0_203 = arith.constant 0 : index
    %c0_204 = arith.constant 0 : index
    %227 = vector.load %arg2[%c0_201, %c1_202, %c0_203, %c0_204] : memref<2x4x2x128xf32, #tpu.memory_space<vmem>>, vector<2x1x2x128xf32>
    %228 = vector.shape_cast %227 : vector<2x1x2x128xf32> to vector<2x2x128xf32>
    %229 = vector.broadcast %226 : f32 to vector<2x2x128xf32>
    %230 = arith.mulf %229, %228 : vector<2x2x128xf32>
    %231 = arith.addf %220, %230 : vector<2x2x128xf32>
    %c3_205 = arith.constant 3 : index
    %c1_206 = arith.constant 1 : index
    %232 = memref.load %arg6[%c3_205, %c1_206] : memref<4x4xf32, #tpu.memory_space<smem>>
    %c0_207 = arith.constant 0 : index
    %c1_208 = arith.constant 1 : index
    %c0_209 = arith.constant 0 : index
    %c0_210 = arith.constant 0 : index
    %233 = vector.load %arg3[%c0_207, %c1_208, %c0_209, %c0_210] : memref<2x4x2x128xf32, #tpu.memory_space<vmem>>, vector<2x1x2x128xf32>
    %234 = vector.shape_cast %233 : vector<2x1x2x128xf32> to vector<2x2x128xf32>
    %235 = vector.broadcast %232 : f32 to vector<2x2x128xf32>
    %236 = arith.mulf %235, %234 : vector<2x2x128xf32>
    %237 = arith.addf %225, %236 : vector<2x2x128xf32>
    %c3_211 = arith.constant 3 : index
    %c2_212 = arith.constant 2 : index
    %238 = memref.load %arg4[%c3_211, %c2_212] : memref<4x4xf32, #tpu.memory_space<smem>>
    %c0_213 = arith.constant 0 : index
    %c2_214 = arith.constant 2 : index
    %c0_215 = arith.constant 0 : index
    %c0_216 = arith.constant 0 : index
    %239 = vector.load %arg2[%c0_213, %c2_214, %c0_215, %c0_216] : memref<2x4x2x128xf32, #tpu.memory_space<vmem>>, vector<2x1x2x128xf32>
    %240 = vector.shape_cast %239 : vector<2x1x2x128xf32> to vector<2x2x128xf32>
    %241 = vector.broadcast %238 : f32 to vector<2x2x128xf32>
    %242 = arith.mulf %241, %240 : vector<2x2x128xf32>
    %243 = arith.addf %231, %242 : vector<2x2x128xf32>
    %c3_217 = arith.constant 3 : index
    %c2_218 = arith.constant 2 : index
    %244 = memref.load %arg6[%c3_217, %c2_218] : memref<4x4xf32, #tpu.memory_space<smem>>
    %c0_219 = arith.constant 0 : index
    %c2_220 = arith.constant 2 : index
    %c0_221 = arith.constant 0 : index
    %c0_222 = arith.constant 0 : index
    %245 = vector.load %arg3[%c0_219, %c2_220, %c0_221, %c0_222] : memref<2x4x2x128xf32, #tpu.memory_space<vmem>>, vector<2x1x2x128xf32>
    %246 = vector.shape_cast %245 : vector<2x1x2x128xf32> to vector<2x2x128xf32>
    %247 = vector.broadcast %244 : f32 to vector<2x2x128xf32>
    %248 = arith.mulf %247, %246 : vector<2x2x128xf32>
    %249 = arith.addf %237, %248 : vector<2x2x128xf32>
    %c3_223 = arith.constant 3 : index
    %c3_224 = arith.constant 3 : index
    %250 = memref.load %arg4[%c3_223, %c3_224] : memref<4x4xf32, #tpu.memory_space<smem>>
    %c0_225 = arith.constant 0 : index
    %c3_226 = arith.constant 3 : index
    %c0_227 = arith.constant 0 : index
    %c0_228 = arith.constant 0 : index
    %251 = vector.load %arg2[%c0_225, %c3_226, %c0_227, %c0_228] : memref<2x4x2x128xf32, #tpu.memory_space<vmem>>, vector<2x1x2x128xf32>
    %252 = vector.shape_cast %251 : vector<2x1x2x128xf32> to vector<2x2x128xf32>
    %253 = vector.broadcast %250 : f32 to vector<2x2x128xf32>
    %254 = arith.mulf %253, %252 : vector<2x2x128xf32>
    %255 = arith.addf %243, %254 : vector<2x2x128xf32>
    %c3_229 = arith.constant 3 : index
    %c3_230 = arith.constant 3 : index
    %256 = memref.load %arg6[%c3_229, %c3_230] : memref<4x4xf32, #tpu.memory_space<smem>>
    %c0_231 = arith.constant 0 : index
    %c3_232 = arith.constant 3 : index
    %c0_233 = arith.constant 0 : index
    %c0_234 = arith.constant 0 : index
    %257 = vector.load %arg3[%c0_231, %c3_232, %c0_233, %c0_234] : memref<2x4x2x128xf32, #tpu.memory_space<vmem>>, vector<2x1x2x128xf32>
    %258 = vector.shape_cast %257 : vector<2x1x2x128xf32> to vector<2x2x128xf32>
    %259 = vector.broadcast %256 : f32 to vector<2x2x128xf32>
    %260 = arith.mulf %259, %258 : vector<2x2x128xf32>
    %261 = arith.addf %249, %260 : vector<2x2x128xf32>
    %c3_235 = arith.constant 3 : index
    %262 = memref.load %arg5[%c3_235] : memref<4xf32, #tpu.memory_space<smem>>
    %263 = vector.broadcast %262 : f32 to vector<2x2x128xf32>
    %264 = arith.addf %255, %263 : vector<2x2x128xf32>
    %265 = arith.negf %264 : vector<2x2x128xf32>
    %266 = math.exp %265 : vector<2x2x128xf32>
    %cst_236 = arith.constant 1.000000e+00 : f32
    %267 = vector.broadcast %cst_236 : f32 to vector<2x2x128xf32>
    %268 = arith.addf %267, %266 : vector<2x2x128xf32>
    %269 = arith.divf %267, %268 : vector<2x2x128xf32>
    %c3_237 = arith.constant 3 : index
    %270 = memref.load %arg7[%c3_237] : memref<4xf32, #tpu.memory_space<smem>>
    %271 = vector.broadcast %270 : f32 to vector<2x2x128xf32>
    %272 = arith.addf %261, %271 : vector<2x2x128xf32>
    %273 = arith.negf %272 : vector<2x2x128xf32>
    %274 = math.exp %273 : vector<2x2x128xf32>
    %cst_238 = arith.constant 1.000000e+00 : f32
    %275 = vector.broadcast %cst_238 : f32 to vector<2x2x128xf32>
    %276 = arith.addf %275, %274 : vector<2x2x128xf32>
    %277 = arith.divf %275, %276 : vector<2x2x128xf32>
    %c0_239 = arith.constant 0 : index
    %c3_240 = arith.constant 3 : index
    %c0_241 = arith.constant 0 : index
    %c0_242 = arith.constant 0 : index
    %278 = vector.load %arg2[%c0_239, %c3_240, %c0_241, %c0_242] : memref<2x4x2x128xf32, #tpu.memory_space<vmem>>, vector<2x1x2x128xf32>
    %279 = vector.shape_cast %278 : vector<2x1x2x128xf32> to vector<2x2x128xf32>
    %280 = arith.mulf %269, %279 : vector<2x2x128xf32>
    %c0_243 = arith.constant 0 : index
    %c3_244 = arith.constant 3 : index
    %c0_245 = arith.constant 0 : index
    %c0_246 = arith.constant 0 : index
    %281 = vector.load %arg3[%c0_243, %c3_244, %c0_245, %c0_246] : memref<2x4x2x128xf32, #tpu.memory_space<vmem>>, vector<2x1x2x128xf32>
    %282 = vector.shape_cast %281 : vector<2x1x2x128xf32> to vector<2x2x128xf32>
    %283 = arith.mulf %277, %282 : vector<2x2x128xf32>
    %284 = arith.addf %280, %283 : vector<2x2x128xf32>
    %c0_247 = arith.constant 0 : index
    %c3_248 = arith.constant 3 : index
    %c0_249 = arith.constant 0 : index
    %c0_250 = arith.constant 0 : index
    %285 = vector.load %arg8[%c0_247, %c3_248, %c0_249, %c0_250] : memref<2x4x2x128xf32, #tpu.memory_space<vmem>>, vector<2x1x2x128xf32>
    %286 = vector.shape_cast %285 : vector<2x1x2x128xf32> to vector<2x2x128xf32>
    %287 = vector.shape_cast %284 : vector<2x2x128xf32> to vector<2x1x2x128xf32>
    tpu.vector_store %arg8[%c0_247, %c3_248, %c0_249, %c0_250], %287 {strides = array<i32>} : memref<2x4x2x128xf32, #tpu.memory_space<vmem>>, vector<2x1x2x128xf32>,
    return
  }
  func.func @transform_0(%arg0: i32, %arg1: i32) -> (i32, i32, i32, i32) {
    %c0_i32 = arith.constant 0 : i32
    %c0_i32_0 = arith.constant 0 : i32
    %c0_i32_1 = arith.constant 0 : i32
    return %arg0, %c0_i32, %arg1, %c0_i32_0 : i32, i32, i32, i32
  }
  func.func @transform_1(%arg0: i32, %arg1: i32) -> (i32, i32, i32, i32) {
    %c0_i32 = arith.constant 0 : i32
    %c0_i32_0 = arith.constant 0 : i32
    %c0_i32_1 = arith.constant 0 : i32
    return %arg0, %c0_i32, %arg1, %c0_i32_0 : i32, i32, i32, i32
  }
  func.func @transform_2(%arg0: i32, %arg1: i32) -> (i32, i32) {
    %c0_i32 = arith.constant 0 : i32
    %c0_i32_0 = arith.constant 0 : i32
    %c0_i32_1 = arith.constant 0 : i32
    return %c0_i32, %c0_i32_0 : i32, i32
  }
  func.func @transform_3(%arg0: i32, %arg1: i32) -> i32 {
    %c0_i32 = arith.constant 0 : i32
    %c0_i32_0 = arith.constant 0 : i32
    return %c0_i32 : i32
  }
  func.func @transform_4(%arg0: i32, %arg1: i32) -> (i32, i32) {
    %c0_i32 = arith.constant 0 : i32
    %c0_i32_0 = arith.constant 0 : i32
    %c0_i32_1 = arith.constant 0 : i32
    return %c0_i32, %c0_i32_0 : i32, i32
  }
  func.func @transform_5(%arg0: i32, %arg1: i32) -> i32 {
    %c0_i32 = arith.constant 0 : i32
    %c0_i32_0 = arith.constant 0 : i32
    return %c0_i32 : i32
  }
  func.func @transform_6(%arg0: i32, %arg1: i32) -> (i32, i32, i32, i32) {
    %c0_i32 = arith.constant 0 : i32
    %c0_i32_0 = arith.constant 0 : i32
    %c0_i32_1 = arith.constant 0 : i32
    return %arg0, %c0_i32, %arg1, %c0_i32_0 : i32, i32, i32, i32
  }
}

</mosaic_0001>

<llo_original>
// kernel: tpu_custom_call.1
$region0: #{tpu_custom_call.1}
  #allocation0 [shape = 'u32[]', space=smem, size = 0x4, offset = 0x4, fixed_abs, tag = 'smem constant byte address 0x4 - core index']
  #allocation1 [shape = 'u32[72,128]{1,0:T(1,128)}', space=vmem, size = 0x9000, scoped, tag = 'internal scratch']
  %s0 = inlined_call_operand.hbm [shape: f32[2,4,2,128], index: 0, kind: input, shape index: {}]
  %s1 = inlined_call_operand.hbm [shape: f32[2,4,2,128], index: 1, kind: input, shape index: {}]
  %s2 = inlined_call_operand.hbm [shape: f32[4,4], index: 2, kind: input, shape index: {}]
  %s3 = inlined_call_operand.vmem [shape: f32[4], index: 3, kind: input, shape index: {}]
  %s4 = inlined_call_operand.hbm [shape: f32[4,4], index: 4, kind: input, shape index: {}]
  %s5 = inlined_call_operand.vmem [shape: f32[4], index: 5, kind: input, shape index: {}]
  %s6 = inlined_call_operand.hbm [shape: f32[2,4,2,128], index: 6, kind: output, shape index: {}]
  %s7 = sld [smem:[#allocation0]]
  $region58: #{tpu_custom_call.1} parent=0
    _
  %s9 = ssub.s32 1, %s7
  %s10 = scalar_select 0, %s9, %s7
  $region1: #{tpu_custom_call.1} parent=0
    #allocation2 [shape = 'u8[8192]{0}', space=vmem, size = 0x2000, scoped, tag = 'input window, operand 0, single buffered']
    #allocation3 [shape = 's32[1]{0}', space=sflag, size = 0x4, scoped, tag = 'scoped memory for tpu_custom_call.1']
    #allocation4 [shape = 's32[1]{0}', space=sflag, size = 0x4, scoped, tag = 'scoped memory for tpu_custom_call.1']
    #allocation5 [shape = 's32[1]{0}', space=sflag, size = 0x4, scoped, tag = 'scoped memory for tpu_custom_call.1']
    #allocation6 [shape = 's32[1]{0}', space=sflag, size = 0x4, scoped, tag = 'scoped memory for tpu_custom_call.1']
    #allocation7 [shape = 'u8[8192]{0}', space=vmem, size = 0x2000, scoped, tag = 'input window, operand 1, single buffered']
    #allocation8 [shape = 's32[1]{0}', space=sflag, size = 0x4, scoped, tag = 'scoped memory for tpu_custom_call.1']
    #allocation9 [shape = 'u8[2048]{0}', space=smem, size = 0x800, scoped, tag = 'input window, operand 2, single buffered']
    #allocation10 [shape = 'u8[512]{0}', space=smem, size = 0x200, scoped, tag = 'input window, operand 3, single buffered']
    #allocation11 [shape = 'u8[2048]{0}', space=smem, size = 0x800, scoped, tag = 'input window, operand 4, single buffered']
    #allocation12 [shape = 's32[1]{0}', space=sflag, size = 0x4, scoped, tag = 'scoped memory for tpu_custom_call.1']
    #allocation13 [shape = 'u8[512]{0}', space=smem, size = 0x200, scoped, tag = 'input window, operand 5, single buffered']
    #allocation14 [shape = 's32[1]{0}', space=sflag, size = 0x4, scoped, tag = 'scoped memory for tpu_custom_call.1']
    #allocation15 [shape = 'u8[8192]{0}', space=vmem, size = 0x2000, scoped, tag = 'output window, operand 0, single buffered']
    %11 = vsyncpa [#allocation3], 0
    %12 = vsyncpa [#allocation8], 0
    %13 = vsyncpa [#allocation5], 0
    %14 = vsyncpa [#allocation6], 0
    %15 = vsyncpa [#allocation12], 0
    %16 = vsyncpa [#allocation14], 0
    %17 = vsyncpa [#allocation4], 0
    // Predicated region
    $region2: #{tpu_custom_call.1} parent=1 // pred_check
      _
    $region3: #{tpu_custom_call.1} parent=1 // pred_check_branch
      %19 = sbr.rel (0) target = $region5
    $region4: #{tpu_custom_call.1} parent=1 // pred_region
      %21 = vsyncadd [#allocation3], 0
      %s22 = sshll.u32 %s0, 4
      %s23 = int_to_ptr.hbm [resolvable:$true] %s22
      %s24 = sshll.u32 [#allocation2], 4
      %s25 = int_to_ptr.vmem [resolvable:$true] %s24
      %30 = dma.hbm_to_vmem [thread:$0]  %s23, 256, %s25, [#allocation3], 32, 32, 2
    $region5: #{tpu_custom_call.1} parent=1 // pred_fallthru
      _
    // Predicated region
    $region6: #{tpu_custom_call.1} parent=1 // pred_check
      _
    $region7: #{tpu_custom_call.1} parent=1 // pred_check_branch
      %32 = sbr.rel (0) target = $region9
    $region8: #{tpu_custom_call.1} parent=1 // pred_region
      %34 = vsyncadd [#allocation8], 0
      %s35 = sshll.u32 %s1, 4
      %s36 = int_to_ptr.hbm [resolvable:$true] %s35
      %s37 = sshll.u32 [#allocation7], 4
      %s38 = int_to_ptr.vmem [resolvable:$true] %s37
      %43 = dma.hbm_to_vmem [thread:$0]  %s36, 256, %s38, [#allocation8], 32, 32, 2
    $region9: #{tpu_custom_call.1} parent=1 // pred_fallthru
      _
    // Predicated region
    $region10: #{tpu_custom_call.1} parent=1 // pred_check
      _
    $region11: #{tpu_custom_call.1} parent=1 // pred_check_branch
      %45 = sbr.rel (0) target = $region13
    $region12: #{tpu_custom_call.1} parent=1 // pred_region
      %47 = vsyncadd [#allocation5], 0
      %s49 = sshll.u32 %s2, 4
      %s50 = int_to_ptr.hbm [resolvable:$true] %s49
      %52 = dma.hbm_to_smem %s50, 64, [#allocation9], [#allocation5]
    $region13: #{tpu_custom_call.1} parent=1 // pred_fallthru
      _
    // Predicated region
    $region14: #{tpu_custom_call.1} parent=1 // pred_check
      _
    $region15: #{tpu_custom_call.1} parent=1 // pred_check_branch
      %54 = sbr.rel (0) target = $region17
    $region16: #{tpu_custom_call.1} parent=1 // pred_region
      %56 = vsyncadd [#allocation6], 0
      %s58 = sshll.u32 %s3, 4
      %s59 = int_to_ptr.vmem [resolvable:$true] %s58
      %61 = dma.vmem_to_smem %s59, 16, [#allocation10], [#allocation6]
    $region17: #{tpu_custom_call.1} parent=1 // pred_fallthru
      _
    // Predicated region
    $region18: #{tpu_custom_call.1} parent=1 // pred_check
      _
    $region19: #{tpu_custom_call.1} parent=1 // pred_check_branch
      %63 = sbr.rel (0) target = $region21
    $region20: #{tpu_custom_call.1} parent=1 // pred_region
      %65 = vsyncadd [#allocation12], 0
      %s67 = sshll.u32 %s4, 4
      %s68 = int_to_ptr.hbm [resolvable:$true] %s67
      %70 = dma.hbm_to_smem %s68, 64, [#allocation11], [#allocation12]
    $region21: #{tpu_custom_call.1} parent=1 // pred_fallthru
      _
    // Predicated region
    $region22: #{tpu_custom_call.1} parent=1 // pred_check
      _
    $region23: #{tpu_custom_call.1} parent=1 // pred_check_branch
      %72 = sbr.rel (0) target = $region25
    $region24: #{tpu_custom_call.1} parent=1 // pred_region
      %74 = vsyncadd [#allocation14], 0
      %s76 = sshll.u32 %s5, 4
      %s77 = int_to_ptr.vmem [resolvable:$true] %s76
      %79 = dma.vmem_to_smem %s77, 16, [#allocation13], [#allocation14]
    $region25: #{tpu_custom_call.1} parent=1 // pred_fallthru
      _
    // Predicated region
    $region26: #{tpu_custom_call.1} parent=1 // pred_check
      _
    $region27: #{tpu_custom_call.1} parent=1 // pred_check_branch
      %81 = sbr.rel (0) target = $region29
    $region28: #{tpu_custom_call.1} parent=1 // pred_region
      %83 = dma.done [#allocation3], 256
    $region29: #{tpu_custom_call.1} parent=1 // pred_fallthru
      _
    // Predicated region
    $region30: #{tpu_custom_call.1} parent=1 // pred_check
      _
    $region31: #{tpu_custom_call.1} parent=1 // pred_check_branch
      %85 = sbr.rel (0) target = $region33
    $region32: #{tpu_custom_call.1} parent=1 // pred_region
      %87 = dma.done [#allocation8], 256
    $region33: #{tpu_custom_call.1} parent=1 // pred_fallthru
      _
    // Predicated region
    $region34: #{tpu_custom_call.1} parent=1 // pred_check
      _
    $region35: #{tpu_custom_call.1} parent=1 // pred_check_branch
      %89 = sbr.rel (0) target = $region37
    $region36: #{tpu_custom_call.1} parent=1 // pred_region
      %91 = dma.done [#allocation5], 64
    $region37: #{tpu_custom_call.1} parent=1 // pred_fallthru
      _
    // Predicated region
    $region38: #{tpu_custom_call.1} parent=1 // pred_check
      _
    $region39: #{tpu_custom_call.1} parent=1 // pred_check_branch
      %93 = sbr.rel (0) target = $region41
    $region40: #{tpu_custom_call.1} parent=1 // pred_region
      %95 = dma.done [#allocation6], 16
    $region41: #{tpu_custom_call.1} parent=1 // pred_fallthru
      _
    // Predicated region
    $region42: #{tpu_custom_call.1} parent=1 // pred_check
      _
    $region43: #{tpu_custom_call.1} parent=1 // pred_check_branch
      %97 = sbr.rel (0) target = $region45
    $region44: #{tpu_custom_call.1} parent=1 // pred_region
      %99 = dma.done [#allocation12], 64
    $region45: #{tpu_custom_call.1} parent=1 // pred_fallthru
      _
    // Predicated region
    $region46: #{tpu_custom_call.1} parent=1 // pred_check
      _
    $region47: #{tpu_custom_call.1} parent=1 // pred_check_branch
      %101 = sbr.rel (0) target = $region49
    $region48: #{tpu_custom_call.1} parent=1 // pred_region
      %103 = dma.done [#allocation14], 16
    $region49: #{tpu_custom_call.1} parent=1 // pred_fallthru
      _
    %104 = sfence
    %s105 = sld [smem:[#allocation9]]
    %v106 = vld [vmem:[#allocation2] sm:$0x3]
    %v107 = vld [vmem:[#allocation2 + $0x8] sm:$0x3]
    %v108 = vstv %s105
    %v109 = vmul.f32 %v108, %v106
    %v110 = vmul.f32 %v108, %v107
    %s111 = sld [smem:[#allocation11]]
    %v112 = vld [vmem:[#allocation7] sm:$0x3]
    %v113 = vld [vmem:[#allocation7 + $0x8] sm:$0x3]
    %v114 = vstv %s111
    %v115 = vmul.f32 %v114, %v112
    %v116 = vmul.f32 %v114, %v113
    %s117 = sld [smem:[#allocation9 + $0x1]]
    %s118 = scalar_lea.vmem [#allocation2], 2
    %v119 = vld [vmem:[%s118] sm:$0x3]
    %v120 = vld [vmem:[%s118 + $0x8] sm:$0x3]
    %v121 = vstv %s117
    %v122 = vmul.f32 %v121, %v119
    %v123 = vmul.f32 %v121, %v120
    %v124 = vadd.f32 %v109, %v122
    %v125 = vadd.f32 %v110, %v123
    %s126 = sld [smem:[#allocation11 + $0x1]]
    %s127 = scalar_lea.vmem [#allocation7], 2
    %v128 = vld [vmem:[%s127] sm:$0x3]
    %v129 = vld [vmem:[%s127 + $0x8] sm:$0x3]
    %v130 = vstv %s126
    %v131 = vmul.f32 %v130, %v128
    %v132 = vmul.f32 %v130, %v129
    %v133 = vadd.f32 %v115, %v131
    %v134 = vadd.f32 %v116, %v132
    %s135 = sld [smem:[#allocation9 + $0x2]]
    %s136 = scalar_lea.vmem [#allocation2], 4
    %v137 = vld [vmem:[%s136] sm:$0x3]
    %v138 = vld [vmem:[%s136 + $0x8] sm:$0x3]
    %v139 = vstv %s135
    %v140 = vmul.f32 %v139, %v137
    %v141 = vmul.f32 %v139, %v138
    %v142 = vadd.f32 %v124, %v140
    %v143 = vadd.f32 %v125, %v141
    %s144 = sld [smem:[#allocation11 + $0x2]]
    %s145 = scalar_lea.vmem [#allocation7], 4
    %v146 = vld [vmem:[%s145] sm:$0x3]
    %v147 = vld [vmem:[%s145 + $0x8] sm:$0x3]
    %v148 = vstv %s144
    %v149 = vmul.f32 %v148, %v146
    %v150 = vmul.f32 %v148, %v147
    %v151 = vadd.f32 %v133, %v149
    %v152 = vadd.f32 %v134, %v150
    %s153 = sld [smem:[#allocation9 + $0x3]]
    %s154 = scalar_lea.vmem [#allocation2], 6
    %v155 = vld [vmem:[%s154] sm:$0x3]
    %v156 = vld [vmem:[%s154 + $0x8] sm:$0x3]
    %v157 = vstv %s153
    %v158 = vmul.f32 %v157, %v155
    %v159 = vmul.f32 %v157, %v156
    %v160 = vadd.f32 %v142, %v158
    %v161 = vadd.f32 %v143, %v159
    %s162 = sld [smem:[#allocation11 + $0x3]]
    %s163 = scalar_lea.vmem [#allocation7], 6
    %v164 = vld [vmem:[%s163] sm:$0x3]
    %v165 = vld [vmem:[%s163 + $0x8] sm:$0x3]
    %v166 = vstv %s162
    %v167 = vmul.f32 %v166, %v164
    %v168 = vmul.f32 %v166, %v165
    %v169 = vadd.f32 %v151, %v167
    %v170 = vadd.f32 %v152, %v168
    %s171 = sld [smem:[#allocation10]]
    %v172 = vstv %s171
    %v173 = vadd.f32 %v160, %v172
    %v174 = vadd.f32 %v161, %v172
    %v175 = vxor.u32 %v173, 2147483648
    %v176 = vxor.u32 %v174, 2147483648
    %v177 = vmul.f32 %v175, 1.442695
    %v178 = vpow.pop %v177
    %v179 = vmul.f32 %v176, 1.442695
    %v180 = vpow.pop %v179
    %v181 = vadd.f32 %v178, 1.0
    %v182 = vadd.f32 %v180, 1.0
    %v183 = vrcp.pop %v181
    %v184 = vmul.f32 %v181, %v183
    %v185 = vsub.f32 1.0, %v184
    %v186 = vmul.f32 %v183, %v185
    %v187 = vadd.f32 %v183, %v186
    %vm188 = vweird.f32 %v181
    %vm189 = vweird.f32 %v183
    %vm190 = vmor %vm188, %vm189
    %v191 = vsel %vm190, %v183, %v187
    %v192 = vand.u32 2147483647, %v181
    %vm193 = vcmp.eq.f32.partialorder %v192, 8.507059e+37
    %v194 = vand.u32 %v181, 2147483648
    %v195 = vor.u32 1.1754944e-38, %v194
    %v196 = vsel %vm193, %v195, %v191
    %v197 = vmul.f32 1.0, %v196
    %v198 = vrcp.pop %v182
    %v199 = vmul.f32 %v182, %v198
    %v200 = vsub.f32 1.0, %v199
    %v201 = vmul.f32 %v198, %v200
    %v202 = vadd.f32 %v198, %v201
    %vm203 = vweird.f32 %v182
    %vm204 = vweird.f32 %v198
    %vm205 = vmor %vm203, %vm204
    %v206 = vsel %vm205, %v198, %v202
    %v207 = vand.u32 2147483647, %v182
    %vm208 = vcmp.eq.f32.partialorder %v207, 8.507059e+37
    %v209 = vand.u32 %v182, 2147483648
    %v210 = vor.u32 1.1754944e-38, %v209
    %v211 = vsel %vm208, %v210, %v206
    %v212 = vmul.f32 1.0, %v211
    %s213 = sld [smem:[#allocation13]]
    %v214 = vstv %s213
    %v215 = vadd.f32 %v169, %v214
    %v216 = vadd.f32 %v170, %v214
    %v217 = vxor.u32 %v215, 2147483648
    %v218 = vxor.u32 %v216, 2147483648
    %v219 = vmul.f32 %v217, 1.442695
    %v220 = vpow.pop %v219
    %v221 = vmul.f32 %v218, 1.442695
    %v222 = vpow.pop %v221
    %v223 = vadd.f32 %v220, 1.0
    %v224 = vadd.f32 %v222, 1.0
    %v225 = vrcp.pop %v223
    %v226 = vmul.f32 %v223, %v225
    %v227 = vsub.f32 1.0, %v226
    %v228 = vmul.f32 %v225, %v227
    %v229 = vadd.f32 %v225, %v228
    %vm230 = vweird.f32 %v223
    %vm231 = vweird.f32 %v225
    %vm232 = vmor %vm230, %vm231
    %v233 = vsel %vm232, %v225, %v229
    %v234 = vand.u32 2147483647, %v223
    %vm235 = vcmp.eq.f32.partialorder %v234, 8.507059e+37
    %v236 = vand.u32 %v223, 2147483648
    %v237 = vor.u32 1.1754944e-38, %v236
    %v238 = vsel %vm235, %v237, %v233
    %v239 = vmul.f32 1.0, %v238
    %v240 = vrcp.pop %v224
    %v241 = vmul.f32 %v224, %v240
    %v242 = vsub.f32 1.0, %v241
    %v243 = vmul.f32 %v240, %v242
    %v244 = vadd.f32 %v240, %v243
    %vm245 = vweird.f32 %v224
    %vm246 = vweird.f32 %v240
    %vm247 = vmor %vm245, %vm246
    %v248 = vsel %vm247, %v240, %v244
    %v249 = vand.u32 2147483647, %v224
    %vm250 = vcmp.eq.f32.partialorder %v249, 8.507059e+37
    %v251 = vand.u32 %v224, 2147483648
    %v252 = vor.u32 1.1754944e-38, %v251
    %v253 = vsel %vm250, %v252, %v248
    %v254 = vmul.f32 1.0, %v253
    %v255 = vmul.f32 %v197, %v106
    %v256 = vmul.f32 %v212, %v107
    %v257 = vmul.f32 %v239, %v112
    %v258 = vmul.f32 %v254, %v113
    %v259 = vadd.f32 %v255, %v257
    %v260 = vadd.f32 %v256, %v258
    %261 = vst [vmem:[#allocation15] sm:$0x3] %v259
    %262 = vst [vmem:[#allocation15 + $0x8] sm:$0x3] %v260
    %s263 = sld [smem:[#allocation9 + $0x80]]
    %v264 = vld [vmem:[#allocation2] sm:$0x3]
    %v265 = vld [vmem:[#allocation2 + $0x8] sm:$0x3]
    %v266 = vstv %s263
    %v267 = vmul.f32 %v266, %v264
    %v268 = vmul.f32 %v266, %v265
    %s269 = sld [smem:[#allocation11 + $0x80]]
    %v270 = vld [vmem:[#allocation7] sm:$0x3]
    %v271 = vld [vmem:[#allocation7 + $0x8] sm:$0x3]
    %v272 = vstv %s269
    %v273 = vmul.f32 %v272, %v270
    %v274 = vmul.f32 %v272, %v271
    %s275 = sld [smem:[#allocation9 + $0x81]]
    %v276 = vld [vmem:[%s118] sm:$0x3]
    %v277 = vld [vmem:[%s118 + $0x8] sm:$0x3]
    %v278 = vstv %s275
    %v279 = vmul.f32 %v278, %v276
    %v280 = vmul.f32 %v278, %v277
    %v281 = vadd.f32 %v267, %v279
    %v282 = vadd.f32 %v268, %v280
    %s283 = sld [smem:[#allocation11 + $0x81]]
    %v284 = vld [vmem:[%s127] sm:$0x3]
    %v285 = vld [vmem:[%s127 + $0x8] sm:$0x3]
    %v286 = vstv %s283
    %v287 = vmul.f32 %v286, %v284
    %v288 = vmul.f32 %v286, %v285
    %v289 = vadd.f32 %v273, %v287
    %v290 = vadd.f32 %v274, %v288
    %s291 = sld [smem:[#allocation9 + $0x82]]
    %v292 = vld [vmem:[%s136] sm:$0x3]
    %v293 = vld [vmem:[%s136 + $0x8] sm:$0x3]
    %v294 = vstv %s291
    %v295 = vmul.f32 %v294, %v292
    %v296 = vmul.f32 %v294, %v293
    %v297 = vadd.f32 %v281, %v295
    %v298 = vadd.f32 %v282, %v296
    %s299 = sld [smem:[#allocation11 + $0x82]]
    %v300 = vld [vmem:[%s145] sm:$0x3]
    %v301 = vld [vmem:[%s145 + $0x8] sm:$0x3]
    %v302 = vstv %s299
    %v303 = vmul.f32 %v302, %v300
    %v304 = vmul.f32 %v302, %v301
    %v305 = vadd.f32 %v289, %v303
    %v306 = vadd.f32 %v290, %v304
    %s307 = sld [smem:[#allocation9 + $0x83]]
    %v308 = vld [vmem:[%s154] sm:$0x3]
    %v309 = vld [vmem:[%s154 + $0x8] sm:$0x3]
    %v310 = vstv %s307
    %v311 = vmul.f32 %v310, %v308
    %v312 = vmul.f32 %v310, %v309
    %v313 = vadd.f32 %v297, %v311
    %v314 = vadd.f32 %v298, %v312
    %s315 = sld [smem:[#allocation11 + $0x83]]
    %v316 = vld [vmem:[%s163] sm:$0x3]
    %v317 = vld [vmem:[%s163 + $0x8] sm:$0x3]
    %v318 = vstv %s315
    %v319 = vmul.f32 %v318, %v316
    %v320 = vmul.f32 %v318, %v317
    %v321 = vadd.f32 %v305, %v319
    %v322 = vadd.f32 %v306, %v320
    %s323 = sld [smem:[#allocation10 + $0x1]]
    %v324 = vstv %s323
    %v325 = vadd.f32 %v313, %v324
    %v326 = vadd.f32 %v314, %v324
    %v327 = vxor.u32 %v325, 2147483648
    %v328 = vxor.u32 %v326, 2147483648
    %v329 = vmul.f32 %v327, 1.442695
    %v330 = vpow.pop %v329
    %v331 = vmul.f32 %v328, 1.442695
    %v332 = vpow.pop %v331
    %v333 = vadd.f32 %v330, 1.0
    %v334 = vadd.f32 %v332, 1.0
    %v335 = vrcp.pop %v333
    %v336 = vmul.f32 %v333, %v335
    %v337 = vsub.f32 1.0, %v336
    %v338 = vmul.f32 %v335, %v337
    %v339 = vadd.f32 %v335, %v338
    %vm340 = vweird.f32 %v333
    %vm341 = vweird.f32 %v335
    %vm342 = vmor %vm340, %vm341
    %v343 = vsel %vm342, %v335, %v339
    %v344 = vand.u32 2147483647, %v333
    %vm345 = vcmp.eq.f32.partialorder %v344, 8.507059e+37
    %v346 = vand.u32 %v333, 2147483648
    %v347 = vor.u32 1.1754944e-38, %v346
    %v348 = vsel %vm345, %v347, %v343
    %v349 = vmul.f32 1.0, %v348
    %v350 = vrcp.pop %v334
    %v351 = vmul.f32 %v334, %v350
    %v352 = vsub.f32 1.0, %v351
    %v353 = vmul.f32 %v350, %v352
    %v354 = vadd.f32 %v350, %v353
    %vm355 = vweird.f32 %v334
    %vm356 = vweird.f32 %v350
    %vm357 = vmor %vm355, %vm356
    %v358 = vsel %vm357, %v350, %v354
    %v359 = vand.u32 2147483647, %v334
    %vm360 = vcmp.eq.f32.partialorder %v359, 8.507059e+37
    %v361 = vand.u32 %v334, 2147483648
    %v362 = vor.u32 1.1754944e-38, %v361
    %v363 = vsel %vm360, %v362, %v358
    %v364 = vmul.f32 1.0, %v363
    %s365 = sld [smem:[#allocation13 + $0x1]]
    %v366 = vstv %s365
    %v367 = vadd.f32 %v321, %v366
    %v368 = vadd.f32 %v322, %v366
    %v369 = vxor.u32 %v367, 2147483648
    %v370 = vxor.u32 %v368, 2147483648
    %v371 = vmul.f32 %v369, 1.442695
    %v372 = vpow.pop %v371
    %v373 = vmul.f32 %v370, 1.442695
    %v374 = vpow.pop %v373
    %v375 = vadd.f32 %v372, 1.0
    %v376 = vadd.f32 %v374, 1.0
    %v377 = vrcp.pop %v375
    %v378 = vmul.f32 %v375, %v377
    %v379 = vsub.f32 1.0, %v378
    %v380 = vmul.f32 %v377, %v379
    %v381 = vadd.f32 %v377, %v380
    %vm382 = vweird.f32 %v375
    %vm383 = vweird.f32 %v377
    %vm384 = vmor %vm382, %vm383
    %v385 = vsel %vm384, %v377, %v381
    %v386 = vand.u32 2147483647, %v375
    %vm387 = vcmp.eq.f32.partialorder %v386, 8.507059e+37
    %v388 = vand.u32 %v375, 2147483648
    %v389 = vor.u32 1.1754944e-38, %v388
    %v390 = vsel %vm387, %v389, %v385
    %v391 = vmul.f32 1.0, %v390
    %v392 = vrcp.pop %v376
    %v393 = vmul.f32 %v376, %v392
    %v394 = vsub.f32 1.0, %v393
    %v395 = vmul.f32 %v392, %v394
    %v396 = vadd.f32 %v392, %v395
    %vm397 = vweird.f32 %v376
    %vm398 = vweird.f32 %v392
    %vm399 = vmor %vm397, %vm398
    %v400 = vsel %vm399, %v392, %v396
    %v401 = vand.u32 2147483647, %v376
    %vm402 = vcmp.eq.f32.partialorder %v401, 8.507059e+37
    %v403 = vand.u32 %v376, 2147483648
    %v404 = vor.u32 1.1754944e-38, %v403
    %v405 = vsel %vm402, %v404, %v400
    %v406 = vmul.f32 1.0, %v405
    %v407 = vmul.f32 %v349, %v276
    %v408 = vmul.f32 %v364, %v277
    %v409 = vmul.f32 %v391, %v284
    %v410 = vmul.f32 %v406, %v285
    %v411 = vadd.f32 %v407, %v409
    %v412 = vadd.f32 %v408, %v410
    %s413 = scalar_lea.vmem [#allocation15], 2
    %414 = vst [vmem:[%s413] sm:$0x3] %v411
    %415 = vst [vmem:[%s413 + $0x8] sm:$0x3] %v412
    %s416 = sld [smem:[#allocation9 + $0x100]]
    %v417 = vld [vmem:[#allocation2] sm:$0x3]
    %v418 = vld [vmem:[#allocation2 + $0x8] sm:$0x3]
    %v419 = vstv %s416
    %v420 = vmul.f32 %v419, %v417
    %v421 = vmul.f32 %v419, %v418
    %s422 = sld [smem:[#allocation11 + $0x100]]
    %v423 = vld [vmem:[#allocation7] sm:$0x3]
    %v424 = vld [vmem:[#allocation7 + $0x8] sm:$0x3]
    %v425 = vstv %s422
    %v426 = vmul.f32 %v425, %v423
    %v427 = vmul.f32 %v425, %v424
    %s428 = sld [smem:[#allocation9 + $0x101]]
    %v429 = vld [vmem:[%s118] sm:$0x3]
    %v430 = vld [vmem:[%s118 + $0x8] sm:$0x3]
    %v431 = vstv %s428
    %v432 = vmul.f32 %v431, %v429
    %v433 = vmul.f32 %v431, %v430
    %v434 = vadd.f32 %v420, %v432
    %v435 = vadd.f32 %v421, %v433
    %s436 = sld [smem:[#allocation11 + $0x101]]
    %v437 = vld [vmem:[%s127] sm:$0x3]
    %v438 = vld [vmem:[%s127 + $0x8] sm:$0x3]
    %v439 = vstv %s436
    %v440 = vmul.f32 %v439, %v437
    %v441 = vmul.f32 %v439, %v438
    %v442 = vadd.f32 %v426, %v440
    %v443 = vadd.f32 %v427, %v441
    %s444 = sld [smem:[#allocation9 + $0x102]]
    %v445 = vld [vmem:[%s136] sm:$0x3]
    %v446 = vld [vmem:[%s136 + $0x8] sm:$0x3]
    %v447 = vstv %s444
    %v448 = vmul.f32 %v447, %v445
    %v449 = vmul.f32 %v447, %v446
    %v450 = vadd.f32 %v434, %v448
    %v451 = vadd.f32 %v435, %v449
    %s452 = sld [smem:[#allocation11 + $0x102]]
    %v453 = vld [vmem:[%s145] sm:$0x3]
    %v454 = vld [vmem:[%s145 + $0x8] sm:$0x3]
    %v455 = vstv %s452
    %v456 = vmul.f32 %v455, %v453
    %v457 = vmul.f32 %v455, %v454
    %v458 = vadd.f32 %v442, %v456
    %v459 = vadd.f32 %v443, %v457
    %s460 = sld [smem:[#allocation9 + $0x103]]
    %v461 = vld [vmem:[%s154] sm:$0x3]
    %v462 = vld [vmem:[%s154 + $0x8] sm:$0x3]
    %v463 = vstv %s460
    %v464 = vmul.f32 %v463, %v461
    %v465 = vmul.f32 %v463, %v462
    %v466 = vadd.f32 %v450, %v464
    %v467 = vadd.f32 %v451, %v465
    %s468 = sld [smem:[#allocation11 + $0x103]]
    %v469 = vld [vmem:[%s163] sm:$0x3]
    %v470 = vld [vmem:[%s163 + $0x8] sm:$0x3]
    %v471 = vstv %s468
    %v472 = vmul.f32 %v471, %v469
    %v473 = vmul.f32 %v471, %v470
    %v474 = vadd.f32 %v458, %v472
    %v475 = vadd.f32 %v459, %v473
    %s476 = sld [smem:[#allocation10 + $0x2]]
    %v477 = vstv %s476
    %v478 = vadd.f32 %v466, %v477
    %v479 = vadd.f32 %v467, %v477
    %v480 = vxor.u32 %v478, 2147483648
    %v481 = vxor.u32 %v479, 2147483648
    %v482 = vmul.f32 %v480, 1.442695
    %v483 = vpow.pop %v482
    %v484 = vmul.f32 %v481, 1.442695
    %v485 = vpow.pop %v484
    %v486 = vadd.f32 %v483, 1.0
    %v487 = vadd.f32 %v485, 1.0
    %v488 = vrcp.pop %v486
    %v489 = vmul.f32 %v486, %v488
    %v490 = vsub.f32 1.0, %v489
    %v491 = vmul.f32 %v488, %v490
    %v492 = vadd.f32 %v488, %v491
    %vm493 = vweird.f32 %v486
    %vm494 = vweird.f32 %v488
    %vm495 = vmor %vm493, %vm494
    %v496 = vsel %vm495, %v488, %v492
    %v497 = vand.u32 2147483647, %v486
    %vm498 = vcmp.eq.f32.partialorder %v497, 8.507059e+37
    %v499 = vand.u32 %v486, 2147483648
    %v500 = vor.u32 1.1754944e-38, %v499
    %v501 = vsel %vm498, %v500, %v496
    %v502 = vmul.f32 1.0, %v501
    %v503 = vrcp.pop %v487
    %v504 = vmul.f32 %v487, %v503
    %v505 = vsub.f32 1.0, %v504
    %v506 = vmul.f32 %v503, %v505
    %v507 = vadd.f32 %v503, %v506
    %vm508 = vweird.f32 %v487
    %vm509 = vweird.f32 %v503
    %vm510 = vmor %vm508, %vm509
    %v511 = vsel %vm510, %v503, %v507
    %v512 = vand.u32 2147483647, %v487
    %vm513 = vcmp.eq.f32.partialorder %v512, 8.507059e+37
    %v514 = vand.u32 %v487, 2147483648
    %v515 = vor.u32 1.1754944e-38, %v514
    %v516 = vsel %vm513, %v515, %v511
    %v517 = vmul.f32 1.0, %v516
    %s518 = sld [smem:[#allocation13 + $0x2]]
    %v519 = vstv %s518
    %v520 = vadd.f32 %v474, %v519
    %v521 = vadd.f32 %v475, %v519
    %v522 = vxor.u32 %v520, 2147483648
    %v523 = vxor.u32 %v521, 2147483648
    %v524 = vmul.f32 %v522, 1.442695
    %v525 = vpow.pop %v524
    %v526 = vmul.f32 %v523, 1.442695
    %v527 = vpow.pop %v526
    %v528 = vadd.f32 %v525, 1.0
    %v529 = vadd.f32 %v527, 1.0
    %v530 = vrcp.pop %v528
    %v531 = vmul.f32 %v528, %v530
    %v532 = vsub.f32 1.0, %v531
    %v533 = vmul.f32 %v530, %v532
    %v534 = vadd.f32 %v530, %v533
    %vm535 = vweird.f32 %v528
    %vm536 = vweird.f32 %v530
    %vm537 = vmor %vm535, %vm536
    %v538 = vsel %vm537, %v530, %v534
    %v539 = vand.u32 2147483647, %v528
    %vm540 = vcmp.eq.f32.partialorder %v539, 8.507059e+37
    %v541 = vand.u32 %v528, 2147483648
    %v542 = vor.u32 1.1754944e-38, %v541
    %v543 = vsel %vm540, %v542, %v538
    %v544 = vmul.f32 1.0, %v543
    %v545 = vrcp.pop %v529
    %v546 = vmul.f32 %v529, %v545
    %v547 = vsub.f32 1.0, %v546
    %v548 = vmul.f32 %v545, %v547
    %v549 = vadd.f32 %v545, %v548
    %vm550 = vweird.f32 %v529
    %vm551 = vweird.f32 %v545
    %vm552 = vmor %vm550, %vm551
    %v553 = vsel %vm552, %v545, %v549
    %v554 = vand.u32 2147483647, %v529
    %vm555 = vcmp.eq.f32.partialorder %v554, 8.507059e+37
    %v556 = vand.u32 %v529, 2147483648
    %v557 = vor.u32 1.1754944e-38, %v556
    %v558 = vsel %vm555, %v557, %v553
    %v559 = vmul.f32 1.0, %v558
    %v560 = vmul.f32 %v502, %v445
    %v561 = vmul.f32 %v517, %v446
    %v562 = vmul.f32 %v544, %v453
    %v563 = vmul.f32 %v559, %v454
    %v564 = vadd.f32 %v560, %v562
    %v565 = vadd.f32 %v561, %v563
    %s566 = scalar_lea.vmem [#allocation15], 4
    %567 = vst [vmem:[%s566] sm:$0x3] %v564
    %568 = vst [vmem:[%s566 + $0x8] sm:$0x3] %v565
    %s569 = sld [smem:[#allocation9 + $0x180]]
    %v570 = vld [vmem:[#allocation2] sm:$0x3]
    %v571 = vld [vmem:[#allocation2 + $0x8] sm:$0x3]
    %v572 = vstv %s569
    %v573 = vmul.f32 %v572, %v570
    %v574 = vmul.f32 %v572, %v571
    %s575 = sld [smem:[#allocation11 + $0x180]]
    %v576 = vld [vmem:[#allocation7] sm:$0x3]
    %v577 = vld [vmem:[#allocation7 + $0x8] sm:$0x3]
    %v578 = vstv %s575
    %v579 = vmul.f32 %v578, %v576
    %v580 = vmul.f32 %v578, %v577
    %s581 = sld [smem:[#allocation9 + $0x181]]
    %v582 = vld [vmem:[%s118] sm:$0x3]
    %v583 = vld [vmem:[%s118 + $0x8] sm:$0x3]
    %v584 = vstv %s581
    %v585 = vmul.f32 %v584, %v582
    %v586 = vmul.f32 %v584, %v583
    %v587 = vadd.f32 %v573, %v585
    %v588 = vadd.f32 %v574, %v586
    %s589 = sld [smem:[#allocation11 + $0x181]]
    %v590 = vld [vmem:[%s127] sm:$0x3]
    %v591 = vld [vmem:[%s127 + $0x8] sm:$0x3]
    %v592 = vstv %s589
    %v593 = vmul.f32 %v592, %v590
    %v594 = vmul.f32 %v592, %v591
    %v595 = vadd.f32 %v579, %v593
    %v596 = vadd.f32 %v580, %v594
    %s597 = sld [smem:[#allocation9 + $0x182]]
    %v598 = vld [vmem:[%s136] sm:$0x3]
    %v599 = vld [vmem:[%s136 + $0x8] sm:$0x3]
    %v600 = vstv %s597
    %v601 = vmul.f32 %v600, %v598
    %v602 = vmul.f32 %v600, %v599
    %v603 = vadd.f32 %v587, %v601
    %v604 = vadd.f32 %v588, %v602
    %s605 = sld [smem:[#allocation11 + $0x182]]
    %v606 = vld [vmem:[%s145] sm:$0x3]
    %v607 = vld [vmem:[%s145 + $0x8] sm:$0x3]
    %v608 = vstv %s605
    %v609 = vmul.f32 %v608, %v606
    %v610 = vmul.f32 %v608, %v607
    %v611 = vadd.f32 %v595, %v609
    %v612 = vadd.f32 %v596, %v610
    %s613 = sld [smem:[#allocation9 + $0x183]]
    %v614 = vld [vmem:[%s154] sm:$0x3]
    %v615 = vld [vmem:[%s154 + $0x8] sm:$0x3]
    %v616 = vstv %s613
    %v617 = vmul.f32 %v616, %v614
    %v618 = vmul.f32 %v616, %v615
    %v619 = vadd.f32 %v603, %v617
    %v620 = vadd.f32 %v604, %v618
    %s621 = sld [smem:[#allocation11 + $0x183]]
    %v622 = vld [vmem:[%s163] sm:$0x3]
    %v623 = vld [vmem:[%s163 + $0x8] sm:$0x3]
    %v624 = vstv %s621
    %v625 = vmul.f32 %v624, %v622
    %v626 = vmul.f32 %v624, %v623
    %v627 = vadd.f32 %v611, %v625
    %v628 = vadd.f32 %v612, %v626
    %s629 = sld [smem:[#allocation10 + $0x3]]
    %v630 = vstv %s629
    %v631 = vadd.f32 %v619, %v630
    %v632 = vadd.f32 %v620, %v630
    %v633 = vxor.u32 %v631, 2147483648
    %v634 = vxor.u32 %v632, 2147483648
    %v635 = vmul.f32 %v633, 1.442695
    %v636 = vpow.pop %v635
    %v637 = vmul.f32 %v634, 1.442695
    %v638 = vpow.pop %v637
    %v639 = vadd.f32 %v636, 1.0
    %v640 = vadd.f32 %v638, 1.0
    %v641 = vrcp.pop %v639
    %v642 = vmul.f32 %v639, %v641
    %v643 = vsub.f32 1.0, %v642
    %v644 = vmul.f32 %v641, %v643
    %v645 = vadd.f32 %v641, %v644
    %vm646 = vweird.f32 %v639
    %vm647 = vweird.f32 %v641
    %vm648 = vmor %vm646, %vm647
    %v649 = vsel %vm648, %v641, %v645
    %v650 = vand.u32 2147483647, %v639
    %vm651 = vcmp.eq.f32.partialorder %v650, 8.507059e+37
    %v652 = vand.u32 %v639, 2147483648
    %v653 = vor.u32 1.1754944e-38, %v652
    %v654 = vsel %vm651, %v653, %v649
    %v655 = vmul.f32 1.0, %v654
    %v656 = vrcp.pop %v640
    %v657 = vmul.f32 %v640, %v656
    %v658 = vsub.f32 1.0, %v657
    %v659 = vmul.f32 %v656, %v658
    %v660 = vadd.f32 %v656, %v659
    %vm661 = vweird.f32 %v640
    %vm662 = vweird.f32 %v656
    %vm663 = vmor %vm661, %vm662
    %v664 = vsel %vm663, %v656, %v660
    %v665 = vand.u32 2147483647, %v640
    %vm666 = vcmp.eq.f32.partialorder %v665, 8.507059e+37
    %v667 = vand.u32 %v640, 2147483648
    %v668 = vor.u32 1.1754944e-38, %v667
    %v669 = vsel %vm666, %v668, %v664
    %v670 = vmul.f32 1.0, %v669
    %s671 = sld [smem:[#allocation13 + $0x3]]
    %v672 = vstv %s671
    %v673 = vadd.f32 %v627, %v672
    %v674 = vadd.f32 %v628, %v672
    %v675 = vxor.u32 %v673, 2147483648
    %v676 = vxor.u32 %v674, 2147483648
    %v677 = vmul.f32 %v675, 1.442695
    %v678 = vpow.pop %v677
    %v679 = vmul.f32 %v676, 1.442695
    %v680 = vpow.pop %v679
    %v681 = vadd.f32 %v678, 1.0
    %v682 = vadd.f32 %v680, 1.0
    %v683 = vrcp.pop %v681
    %v684 = vmul.f32 %v681, %v683
    %v685 = vsub.f32 1.0, %v684
    %v686 = vmul.f32 %v683, %v685
    %v687 = vadd.f32 %v683, %v686
    %vm688 = vweird.f32 %v681
    %vm689 = vweird.f32 %v683
    %vm690 = vmor %vm688, %vm689
    %v691 = vsel %vm690, %v683, %v687
    %v692 = vand.u32 2147483647, %v681
    %vm693 = vcmp.eq.f32.partialorder %v692, 8.507059e+37
    %v694 = vand.u32 %v681, 2147483648
    %v695 = vor.u32 1.1754944e-38, %v694
    %v696 = vsel %vm693, %v695, %v691
    %v697 = vmul.f32 1.0, %v696
    %v698 = vrcp.pop %v682
    %v699 = vmul.f32 %v682, %v698
    %v700 = vsub.f32 1.0, %v699
    %v701 = vmul.f32 %v698, %v700
    %v702 = vadd.f32 %v698, %v701
    %vm703 = vweird.f32 %v682
    %vm704 = vweird.f32 %v698
    %vm705 = vmor %vm703, %vm704
    %v706 = vsel %vm705, %v698, %v702
    %v707 = vand.u32 2147483647, %v682
    %vm708 = vcmp.eq.f32.partialorder %v707, 8.507059e+37
    %v709 = vand.u32 %v682, 2147483648
    %v710 = vor.u32 1.1754944e-38, %v709
    %v711 = vsel %vm708, %v710, %v706
    %v712 = vmul.f32 1.0, %v711
    %v713 = vmul.f32 %v655, %v614
    %v714 = vmul.f32 %v670, %v615
    %v715 = vmul.f32 %v697, %v622
    %v716 = vmul.f32 %v712, %v623
    %v717 = vadd.f32 %v713, %v715
    %v718 = vadd.f32 %v714, %v716
    %s719 = scalar_lea.vmem [#allocation15], 6
    %720 = vst [vmem:[%s719] sm:$0x3] %v717
    %721 = vst [vmem:[%s719 + $0x8] sm:$0x3] %v718
    // Predicated region
    $region50: #{tpu_custom_call.1} parent=1 // pred_check
      _
    $region51: #{tpu_custom_call.1} parent=1 // pred_check_branch
      %723 = sbr.rel (0) target = $region53
    $region52: #{tpu_custom_call.1} parent=1 // pred_region
      %725 = vsyncadd [#allocation4], 0
      %s726 = sshll.u32 [#allocation15], 4
      %s727 = int_to_ptr.vmem [resolvable:$true] %s726
      %s728 = sshll.u32 %s6, 4
      %s729 = int_to_ptr.hbm [resolvable:$true] %s728
      %734 = dma.vmem_to_hbm [thread:$0]  %s727, 256, %s729, [#allocation4], 32, 32, 2
    $region53: #{tpu_custom_call.1} parent=1 // pred_fallthru
      _
    // Predicated region
    $region54: #{tpu_custom_call.1} parent=1 // pred_check
      _
    $region55: #{tpu_custom_call.1} parent=1 // pred_check_branch
      %736 = sbr.rel (0) target = $region57
    $region56: #{tpu_custom_call.1} parent=1 // pred_region
      %738 = dma.done [#allocation4], 256
    $region57: #{tpu_custom_call.1} parent=1 // pred_fallthru
      _
    %739 = vsyncpa [#allocation3], 1
    %740 = vsyncpa [#allocation8], 1
    %741 = vsyncpa [#allocation4], 1
    %742 = vsyncpa [#allocation5], 1
    %743 = vsyncpa [#allocation12], 1
    %744 = vsyncpa [#allocation6], 1
    %745 = vsyncpa [#allocation14], 1

</llo_original>
